<compile_context>
chip_gen: v7x
topology: tpu7x:2x2x1
jax: 0.10.0
libtpu: 0.0.40
codegen_flags: <defaults>
</compile_context>

<pallas_src>
import functools

import jax
import jax.numpy as jnp
from jax.experimental import pallas as pl
from jax.experimental.pallas import tpu as pltpu


def _round_up(x, m):
    return ((x + m - 1) // m) * m


def _const_spec(shape):
    nd = len(shape)
    return pl.BlockSpec(shape, lambda i, _nd=nd: (0,) * _nd)


# ---------------- fused kernel ----------------
#
# Row ordering everywhere is spatial-major / batch-minor (row = spatial*bt + b) with
# bt a multiple of 8, so every window is a contiguous, statically-offset, 8-aligned
# row slice.  Lane layouts:
#   stage-1 accumulator : lane = t*128 + oc*16 + pw      (ow = 2*pw + t)
#   pooled1 scratch     : lane = oc*16 + pw              (oc<6, pw<12)
#   stage-2 accumulator : lane = t2*128 + oc2*8 + pw2    (ow2 = 2*pw2 + t2)
#   conv2/pooled2, fc   : lane = oc2*8 + pw2             (oc2<12, pw2<4)

def fused_lenet_kernel(x_ref, m1_ref, b1_ref, n2_ref, b2_ref,
                       wf1_ref, bf1_ref, wf2_ref, bf2_ref, wf3_ref, bf3_ref,
                       o_ref, p1_ref, o2_ref, *, bt):
    f32 = jnp.float32

    # ---- stage 1: conv1 (5x5, 1->6) + bias + 2x2 max-pool + ReLU -> p1_ref (12bt,128)
    # x_ref is (28, bt, 28) = [h, b, w].  Split even/odd input rows with a layout-
    # trivial reshape; every vertical tap window is then a static major-dim slice.
    xr = x_ref[...].reshape(14, 2, bt, 28)          # [h//2, h%2, b, w]
    xpar = (xr[:, 0], xr[:, 1])                     # even / odd input rows, (14, bt, 28)

    def win(e):                                     # rows h = e, e+2, ..., e+22
        return xpar[e % 2][e // 2: e // 2 + 12].reshape(12 * bt, 28)

    wins = [win(e) for e in range(6)]               # the 6 distinct vertical windows
    pooled = None
    for s in range(2):                              # output-row parity: oh = 2*ph + s
        # fatten the 5 K=28 tap matmuls into one K=140 matmul
        cat = jnp.concatenate([wins[s + di] for di in range(5)], axis=1)   # (12bt, 140)
        acc = jnp.dot(cat, m1_ref[...], preferred_element_type=f32) + b1_ref[...]
        m = jnp.maximum(acc[:, :128], acc[:, 128:])                        # pool over ow parity
        pooled = m if pooled is None else jnp.maximum(pooled, m)           # pool over oh parity
    p1_ref[...] = jnp.maximum(pooled, 0.0)          # ReLU (commutes with max)

    # ---- stage 2: conv2 (5x5, 6->12) + bias + horizontal pool + ReLU -> o2_ref (8bt,128)
    # 5 tap windows are full-128-lane, 8-aligned row slices; lane-concat is free.
    cat2 = jnp.concatenate(
        [p1_ref[pl.ds(di * bt, 8 * bt), :] for di in range(5)], axis=1)    # (8bt, 640)
    acc2 = jnp.dot(cat2, n2_ref[...], preferred_element_type=f32) + b2_ref[...]
    o2_ref[...] = jnp.maximum(jnp.maximum(acc2[:, :128], acc2[:, 128:]), 0.0)

    # ---- stage 3: vertical pool of conv2 + fc1 + ReLU + fc2 + ReLU + out ----
    rv = [jnp.maximum(o2_ref[pl.ds((2 * ph) * bt, bt), :],
                      o2_ref[pl.ds((2 * ph + 1) * bt, bt), :]) for ph in range(4)]
    h1_in = jnp.concatenate(rv, axis=1)             # (bt, 512), 128-aligned pieces
    h1 = jnp.maximum(jnp.dot(h1_in, wf1_ref[...], preferred_element_type=f32)
                     + bf1_ref[...], 0.0)
    h2 = jnp.maximum(jnp.dot(h1, wf2_ref[...], preferred_element_type=f32)
                     + bf2_ref[...], 0.0)
    o_ref[...] = (jnp.dot(h2, wf3_ref[...], preferred_element_type=f32)
                  + bf3_ref[...])


# ---------------- one-time weight repacking (outside the hot path) ----------------

def pack_params(p):
    f32 = jnp.float32
    w1 = p["w_conv1"].astype(f32)    # (6, 1, 5, 5)
    b1 = p["b_conv1"].astype(f32)    # (6,)
    w2 = p["w_conv2"].astype(f32)    # (12, 6, 5, 5)
    b2 = p["b_conv2"].astype(f32)    # (12,)

    # conv1 Toeplitz, fattened over the 5 vertical taps:
    #   m1[di*28 + w_in, t*128 + oc*16 + pw] = w1[oc,0,di, w_in - 2*pw - t]
    w_in = jnp.arange(28)[:, None]
    pw = jnp.arange(16)[None, :]
    m_blocks = []
    for di in range(5):
        w1d = w1[:, 0, di, :]                               # (6, 5)
        per_t = []
        for t in range(2):
            dj = w_in - 2 * pw - t                          # (28, 16)
            valid = (dj >= 0) & (dj < 5) & (pw < 12)
            g = w1d[:, jnp.clip(dj, 0, 4)]                  # (6, 28, 16)
            g = jnp.where(valid[None], g, 0.0)
            g = jnp.transpose(g, (1, 0, 2))                 # (w_in, oc, pw)
            g = jnp.pad(g, ((0, 0), (0, 2), (0, 0)))        # oc 6 -> 8
            per_t.append(g)
        m_blocks.append(jnp.stack(per_t, axis=1).reshape(28, 256))
    m1 = jnp.concatenate(m_blocks, axis=0)                  # (140, 256)
    b1_lane = jnp.zeros((2, 8, 16), f32).at[:, :6, :12].set(b1[None, :, None])
    b1_lane = b1_lane.reshape(1, 256)

    # conv2 blocks, fattened over the 5 vertical taps:
    #   n2[di*128 + ic*16 + pw_in, t2*128 + oc2*8 + pw2] = w2[oc2,ic,di, pw_in-2*pw2-t2]
    pw_in = jnp.arange(16)[:, None]
    pw2 = jnp.arange(8)[None, :]
    n_blocks = []
    for di in range(5):
        w2d = w2[:, :, di, :]                               # (12, 6, 5)
        per_t = []
        for t in range(2):
            dj = pw_in - 2 * pw2 - t                        # (16, 8)
            valid = (dj >= 0) & (dj < 5) & (pw_in < 12) & (pw2 < 4)
            g = w2d[:, :, jnp.clip(dj, 0, 4)]               # (12, 6, 16, 8)
            g = jnp.where(valid[None, None], g, 0.0)
            g = jnp.transpose(g, (1, 2, 0, 3))              # (ic, pw_in, oc2, pw2)
            g = jnp.pad(g, ((0, 2), (0, 0), (0, 4), (0, 0)))  # ic->8, oc2->16
            per_t.append(g)
        n_blocks.append(jnp.stack(per_t, axis=2).reshape(128, 256))
    n2 = jnp.concatenate(n_blocks, axis=0)                  # (640, 256)
    b2_lane = jnp.zeros((2, 16, 8), f32).at[:, :12, :4].set(b2[None, :, None])
    b2_lane = b2_lane.reshape(1, 256)

    # fc1, fused over the 4 pooled-row groups: row = ph2*128 + oc2*8 + pw2,
    # permuted from the PyTorch flatten order (c*16 + h*4 + w).
    wf1 = p["w_fc1"].astype(f32).reshape(12, 4, 4, 120)     # (c, h, w, n)
    wf1 = jnp.transpose(wf1, (1, 0, 2, 3))                  # (h, c, w, n)
    wf1 = jnp.pad(wf1, ((0, 0), (0, 4), (0, 4), (0, 8)))    # (4, 16, 8, 128)
    wf1 = wf1.reshape(512, 128)
    bf1 = jnp.zeros((1, 128), f32).at[0, :120].set(p["b_fc1"])
    wf2 = jnp.zeros((128, 128), f32).at[:120, :60].set(p["w_fc2"])
    bf2 = jnp.zeros((1, 128), f32).at[0, :60].set(p["b_fc2"])
    wf3 = jnp.zeros((128, 128), f32).at[:60, :10].set(p["w_out"])
    bf3 = jnp.zeros((1, 128), f32).at[0, :10].set(p["b_out"])

    return dict(m1=m1, b1=b1_lane, n2=n2, b2=b2_lane,
                wf1=wf1, bf1=bf1, wf2=wf2, bf2=bf2, wf3=wf3, bf3=bf3)


# ---------------- forward ----------------

def forward(x, pk, *, b_tile=None):
    B = x.shape[0]
    if b_tile is None:
        b_tile = min(128, _round_up(B, 8))      # 8-aligned tile; bounded for v7x VMEM
    b_tile = max(8, _round_up(b_tile, 8))
    Bp = _round_up(B, b_tile)
    n_tiles = Bp // b_tile

    # (B,1,28,28) -> (28, Bp, 28) [h, b, w]: one fused pad+transpose, a single small
    # HBM array (no per-call parity split into two arrays).
    xi = x[:, 0]
    if Bp != B:
        xi = jnp.pad(xi, ((0, Bp - B), (0, 0), (0, 0)))
    xt = jnp.transpose(xi, (1, 0, 2))

    weights = (pk["m1"], pk["b1"], pk["n2"], pk["b2"], pk["wf1"], pk["bf1"],
               pk["wf2"], pk["bf2"], pk["wf3"], pk["bf3"])

    in_specs = [pl.BlockSpec((28, b_tile, 28), lambda i: (0, i, 0))]
    in_specs += [_const_spec(w.shape) for w in weights]

    bytes_w = sum(int(w.size) * 4 for w in weights)
    cost = pl.CostEstimate(
        flops=n_tiles * 2 * b_tile * (2 * 12 * 140 * 256     # conv1 (two parities)
                                      + 8 * 640 * 256        # conv2
                                      + 512 * 128            # fc1
                                      + 2 * 128 * 128),      # fc2 + out
        transcendentals=0,
        bytes_accessed=int(xt.size) * 4 + bytes_w + Bp * 128 * 4)

    out = pl.pallas_call(
        functools.partial(fused_lenet_kernel, bt=b_tile),
        out_shape=jax.ShapeDtypeStruct((Bp, 128), jnp.float32),
        grid=(n_tiles,),
        in_specs=in_specs,
        out_specs=pl.BlockSpec((b_tile, 128), lambda i: (i, 0)),
        scratch_shapes=[pltpu.VMEM((12 * b_tile, 128), jnp.float32),   # pooled conv1
                        pltpu.VMEM((8 * b_tile, 128), jnp.float32)],   # half-pooled conv2
        compiler_params=pltpu.CompilerParams(
            dimension_semantics=("parallel",),
            vmem_limit_bytes=32 * 1024 * 1024),
        cost_estimate=cost,
    )(xt, *weights)
    return out[:B, :10]


# ---------------- params & pure-JAX reference ----------------

def init_params(key):
    ks = jax.random.split(key, 10)

    def u(k, shape, fan_in):
        bound = 1.0 / (fan_in ** 0.5)
        return jax.random.uniform(k, shape, jnp.float32, -bound, bound)

    return dict(
        w_conv1=u(ks[0], (6, 1, 5, 5), 25),
        b_conv1=u(ks[1], (6,), 25),
        w_conv2=u(ks[2], (12, 6, 5, 5), 150),
        b_conv2=u(ks[3], (12,), 150),
        w_fc1=u(ks[4], (192, 120), 192),   # stored (in, out)
        b_fc1=u(ks[5], (120,), 192),
        w_fc2=u(ks[6], (120, 60), 120),
        b_fc2=u(ks[7], (60,), 120),
        w_out=u(ks[8], (60, 10), 60),
        b_out=u(ks[9], (10,), 60),
    )


def ref_forward(x, p):
    dn = ("NCHW", "OIHW", "NCHW")
    t = jax.lax.conv_general_dilated(x, p["w_conv1"], (1, 1), "VALID",
                                     dimension_numbers=dn)
    t = jnp.maximum(t + p["b_conv1"][None, :, None, None], 0.0)
    t = jax.lax.reduce_window(t, -jnp.inf, jax.lax.max,
                              (1, 1, 2, 2), (1, 1, 2, 2), "VALID")
    t = jax.lax.conv_general_dilated(t, p["w_conv2"], (1, 1), "VALID",
                                     dimension_numbers=dn)
    t = jnp.maximum(t + p["b_conv2"][None, :, None, None], 0.0)
    t = jax.lax.reduce_window(t, -jnp.inf, jax.lax.max,
                              (1, 1, 2, 2), (1, 1, 2, 2), "VALID")
    t = t.reshape(t.shape[0], -1)
    t = jnp.maximum(t @ p["w_fc1"] + p["b_fc1"], 0.0)
    t = jnp.maximum(t @ p["w_fc2"] + p["b_fc2"], 0.0)
    return t @ p["w_out"] + p["b_out"]


if __name__ == "__main__":
    key = jax.random.PRNGKey(0)
    kx, kp = jax.random.split(key)
    x = jax.random.normal(kx, (2, 1, 28, 28), jnp.float32)
    params = init_params(kp)
    packed = pack_params(params)          # one-time repack (would be folded into init)

    fwd = jax.jit(forward)
    out = jax.block_until_ready(fwd(x, packed))

    ref = ref_forward(x, params)
    assert out.shape == (2, 10)
    err = float(jnp.max(jnp.abs(out - ref)))
    assert jnp.allclose(out, ref, atol=1e-3, rtol=1e-3), err

    print("KERNEL_OK")
</pallas_src>

<mosaic_0001>
module attributes {stable_mosaic.version = 11 : i64} {
  func.func @fused_lenet_kernel(%arg0: i32, %arg1: memref<28x8x28xf32, #tpu.memory_space<vmem>>, %arg2: memref<140x256xf32, #tpu.memory_space<vmem>>, %arg3: memref<1x256xf32, #tpu.memory_space<vmem>>, %arg4: memref<640x256xf32, #tpu.memory_space<vmem>>, %arg5: memref<1x256xf32, #tpu.memory_space<vmem>>, %arg6: memref<512x128xf32, #tpu.memory_space<vmem>>, %arg7: memref<1x128xf32, #tpu.memory_space<vmem>>, %arg8: memref<128x128xf32, #tpu.memory_space<vmem>>, %arg9: memref<1x128xf32, #tpu.memory_space<vmem>>, %arg10: memref<128x128xf32, #tpu.memory_space<vmem>>, %arg11: memref<1x128xf32, #tpu.memory_space<vmem>>, %arg12: memref<8x128xf32, #tpu.memory_space<vmem>>, %arg13: memref<96x128xf32, #tpu.memory_space<vmem>>, %arg14: memref<64x128xf32, #tpu.memory_space<vmem>>) attributes {dimension_semantics = [#tpu.dimension_semantics<parallel>], iteration_bounds = array<i64: 1>, scalar_prefetch = 0 : i64, scratch_operands = 2 : i64, tpu.core_type = #tpu.core_type<tc>, window_params = [{transform_indices = @transform_0, window_bounds = array<i64: 28, 8, 28>}, {pipeline_mode = #tpu.pipeline_mode<synchronous>, transform_indices = @transform_1, window_bounds = array<i64: 140, 256>}, {pipeline_mode = #tpu.pipeline_mode<synchronous>, transform_indices = @transform_2, window_bounds = array<i64: 1, 256>}, {pipeline_mode = #tpu.pipeline_mode<synchronous>, transform_indices = @transform_3, window_bounds = array<i64: 640, 256>}, {pipeline_mode = #tpu.pipeline_mode<synchronous>, transform_indices = @transform_4, window_bounds = array<i64: 1, 256>}, {pipeline_mode = #tpu.pipeline_mode<synchronous>, transform_indices = @transform_5, window_bounds = array<i64: 512, 128>}, {pipeline_mode = #tpu.pipeline_mode<synchronous>, transform_indices = @transform_6, window_bounds = array<i64: 1, 128>}, {pipeline_mode = #tpu.pipeline_mode<synchronous>, transform_indices = @transform_7, window_bounds = array<i64: 128, 128>}, {pipeline_mode = #tpu.pipeline_mode<synchronous>, transform_indices = @transform_8, window_bounds = array<i64: 1, 128>}, {pipeline_mode = #tpu.pipeline_mode<synchronous>, transform_indices = @transform_9, window_bounds = array<i64: 128, 128>}, {pipeline_mode = #tpu.pipeline_mode<synchronous>, transform_indices = @transform_10, window_bounds = array<i64: 1, 128>}, {transform_indices = @transform_11, window_bounds = array<i64: 8, 128>}]} {
    %c0 = arith.constant 0 : index
    %c0_0 = arith.constant 0 : index
    %c0_1 = arith.constant 0 : index
    %0 = vector.load %arg1[%c0, %c0_0, %c0_1] : memref<28x8x28xf32, #tpu.memory_space<vmem>>, vector<28x8x28xf32>
    %1 = vector.shape_cast %0 : vector<28x8x28xf32> to vector<14x2x8x28xf32>
    %2 = vector.extract_strided_slice %1 {offsets = [0, 0, 0, 0], sizes = [14, 1, 8, 28], strides = [1, 1, 1, 1]} : vector<14x2x8x28xf32> to vector<14x1x8x28xf32>
    %3 = vector.shape_cast %2 : vector<14x1x8x28xf32> to vector<14x8x28xf32>
    %4 = vector.extract_strided_slice %1 {offsets = [0, 1, 0, 0], sizes = [14, 1, 8, 28], strides = [1, 1, 1, 1]} : vector<14x2x8x28xf32> to vector<14x1x8x28xf32>
    %5 = vector.shape_cast %4 : vector<14x1x8x28xf32> to vector<14x8x28xf32>
    %6 = vector.extract_strided_slice %3 {offsets = [0, 0, 0], sizes = [12, 8, 28], strides = [1, 1, 1]} : vector<14x8x28xf32> to vector<12x8x28xf32>
    %7 = vector.shape_cast %6 : vector<12x8x28xf32> to vector<96x28xf32>
    %8 = vector.extract_strided_slice %5 {offsets = [0, 0, 0], sizes = [12, 8, 28], strides = [1, 1, 1]} : vector<14x8x28xf32> to vector<12x8x28xf32>
    %9 = vector.shape_cast %8 : vector<12x8x28xf32> to vector<96x28xf32>
    %10 = vector.extract_strided_slice %3 {offsets = [1, 0, 0], sizes = [12, 8, 28], strides = [1, 1, 1]} : vector<14x8x28xf32> to vector<12x8x28xf32>
    %11 = vector.shape_cast %10 : vector<12x8x28xf32> to vector<96x28xf32>
    %12 = vector.extract_strided_slice %5 {offsets = [1, 0, 0], sizes = [12, 8, 28], strides = [1, 1, 1]} : vector<14x8x28xf32> to vector<12x8x28xf32>
    %13 = vector.shape_cast %12 : vector<12x8x28xf32> to vector<96x28xf32>
    %14 = vector.extract_strided_slice %3 {offsets = [2, 0, 0], sizes = [12, 8, 28], strides = [1, 1, 1]} : vector<14x8x28xf32> to vector<12x8x28xf32>
    %15 = vector.shape_cast %14 : vector<12x8x28xf32> to vector<96x28xf32>
    %16 = vector.extract_strided_slice %5 {offsets = [2, 0, 0], sizes = [12, 8, 28], strides = [1, 1, 1]} : vector<14x8x28xf32> to vector<12x8x28xf32>
    %17 = vector.shape_cast %16 : vector<12x8x28xf32> to vector<96x28xf32>
    %18 = tpu.concatenate %7, %9, %11, %13, %15 in 1 : vector<96x28xf32>, vector<96x28xf32>, vector<96x28xf32>, vector<96x28xf32>, vector<96x28xf32> -> vector<96x140xf32>
    %c0_2 = arith.constant 0 : index
    %c0_3 = arith.constant 0 : index
    %19 = vector.load %arg2[%c0_2, %c0_3] : memref<140x256xf32, #tpu.memory_space<vmem>>, vector<140x256xf32>
    %cst = arith.constant dense<0.000000e+00> : vector<96x256xf32>
    %20 = tpu.matmul %18, %19, %cst {dimension_numbers = #tpu.dot_dimension_numbers<[1], [0], [0], [1], [0, 0, 1, 1], [], []>} : vector<96x140xf32>, vector<140x256xf32>, vector<96x256xf32> -> vector<96x256xf32>
    %c0_4 = arith.constant 0 : index
    %c0_5 = arith.constant 0 : index
    %21 = vector.load %arg3[%c0_4, %c0_5] : memref<1x256xf32, #tpu.memory_space<vmem>>, vector<1x256xf32>
    %22 = vector.broadcast %21 : vector<1x256xf32> to vector<96x256xf32>
    %23 = arith.addf %20, %22 : vector<96x256xf32>
    %24 = vector.extract_strided_slice %23 {offsets = [0, 0], sizes = [96, 128], strides = [1, 1]} : vector<96x256xf32> to vector<96x128xf32>
    %25 = vector.extract_strided_slice %23 {offsets = [0, 128], sizes = [96, 128], strides = [1, 1]} : vector<96x256xf32> to vector<96x128xf32>
    %26 = arith.maximumf %24, %25 : vector<96x128xf32>
    %27 = tpu.concatenate %9, %11, %13, %15, %17 in 1 : vector<96x28xf32>, vector<96x28xf32>, vector<96x28xf32>, vector<96x28xf32>, vector<96x28xf32> -> vector<96x140xf32>
    %c0_6 = arith.constant 0 : index
    %c0_7 = arith.constant 0 : index
    %28 = vector.load %arg2[%c0_6, %c0_7] : memref<140x256xf32, #tpu.memory_space<vmem>>, vector<140x256xf32>
    %cst_8 = arith.constant dense<0.000000e+00> : vector<96x256xf32>
    %29 = tpu.matmul %27, %28, %cst_8 {dimension_numbers = #tpu.dot_dimension_numbers<[1], [0], [0], [1], [0, 0, 1, 1], [], []>} : vector<96x140xf32>, vector<140x256xf32>, vector<96x256xf32> -> vector<96x256xf32>
    %c0_9 = arith.constant 0 : index
    %c0_10 = arith.constant 0 : index
    %30 = vector.load %arg3[%c0_9, %c0_10] : memref<1x256xf32, #tpu.memory_space<vmem>>, vector<1x256xf32>
    %31 = vector.broadcast %30 : vector<1x256xf32> to vector<96x256xf32>
    %32 = arith.addf %29, %31 : vector<96x256xf32>
    %33 = vector.extract_strided_slice %32 {offsets = [0, 0], sizes = [96, 128], strides = [1, 1]} : vector<96x256xf32> to vector<96x128xf32>
    %34 = vector.extract_strided_slice %32 {offsets = [0, 128], sizes = [96, 128], strides = [1, 1]} : vector<96x256xf32> to vector<96x128xf32>
    %35 = arith.maximumf %33, %34 : vector<96x128xf32>
    %36 = arith.maximumf %26, %35 : vector<96x128xf32>
    %cst_11 = arith.constant 0.000000e+00 : f32
    %37 = vector.broadcast %cst_11 : f32 to vector<96x128xf32>
    %38 = arith.maximumf %36, %37 : vector<96x128xf32>
    %c0_12 = arith.constant 0 : index
    %c0_13 = arith.constant 0 : index
    %39 = vector.load %arg13[%c0_12, %c0_13] : memref<96x128xf32, #tpu.memory_space<vmem>>, vector<96x128xf32>
    tpu.vector_store %arg13[%c0_12, %c0_13], %38 {strides = array<i32>} : memref<96x128xf32, #tpu.memory_space<vmem>>, vector<96x128xf32>,
    %c0_14 = arith.constant 0 : index
    %c0_15 = arith.constant 0 : index
    %40 = vector.load %arg13[%c0_14, %c0_15] : memref<96x128xf32, #tpu.memory_space<vmem>>, vector<64x128xf32>
    %c8 = arith.constant 8 : index
    %c0_16 = arith.constant 0 : index
    %41 = vector.load %arg13[%c8, %c0_16] : memref<96x128xf32, #tpu.memory_space<vmem>>, vector<64x128xf32>
    %c16 = arith.constant 16 : index
    %c0_17 = arith.constant 0 : index
    %42 = vector.load %arg13[%c16, %c0_17] : memref<96x128xf32, #tpu.memory_space<vmem>>, vector<64x128xf32>
    %c24 = arith.constant 24 : index
    %c0_18 = arith.constant 0 : index
    %43 = vector.load %arg13[%c24, %c0_18] : memref<96x128xf32, #tpu.memory_space<vmem>>, vector<64x128xf32>
    %c32 = arith.constant 32 : index
    %c0_19 = arith.constant 0 : index
    %44 = vector.load %arg13[%c32, %c0_19] : memref<96x128xf32, #tpu.memory_space<vmem>>, vector<64x128xf32>
    %45 = tpu.concatenate %40, %41, %42, %43, %44 in 1 : vector<64x128xf32>, vector<64x128xf32>, vector<64x128xf32>, vector<64x128xf32>, vector<64x128xf32> -> vector<64x640xf32>
    %c0_20 = arith.constant 0 : index
    %c0_21 = arith.constant 0 : index
    %46 = vector.load %arg4[%c0_20, %c0_21] : memref<640x256xf32, #tpu.memory_space<vmem>>, vector<640x256xf32>
    %cst_22 = arith.constant dense<0.000000e+00> : vector<64x256xf32>
    %47 = tpu.matmul %45, %46, %cst_22 {dimension_numbers = #tpu.dot_dimension_numbers<[1], [0], [0], [1], [0, 0, 1, 1], [], []>} : vector<64x640xf32>, vector<640x256xf32>, vector<64x256xf32> -> vector<64x256xf32>
    %c0_23 = arith.constant 0 : index
    %c0_24 = arith.constant 0 : index
    %48 = vector.load %arg5[%c0_23, %c0_24] : memref<1x256xf32, #tpu.memory_space<vmem>>, vector<1x256xf32>
    %49 = vector.broadcast %48 : vector<1x256xf32> to vector<64x256xf32>
    %50 = arith.addf %47, %49 : vector<64x256xf32>
    %51 = vector.extract_strided_slice %50 {offsets = [0, 0], sizes = [64, 128], strides = [1, 1]} : vector<64x256xf32> to vector<64x128xf32>
    %52 = vector.extract_strided_slice %50 {offsets = [0, 128], sizes = [64, 128], strides = [1, 1]} : vector<64x256xf32> to vector<64x128xf32>
    %53 = arith.maximumf %51, %52 : vector<64x128xf32>
    %cst_25 = arith.constant 0.000000e+00 : f32
    %54 = vector.broadcast %cst_25 : f32 to vector<64x128xf32>
    %55 = arith.maximumf %53, %54 : vector<64x128xf32>
    %c0_26 = arith.constant 0 : index
    %c0_27 = arith.constant 0 : index
    %56 = vector.load %arg14[%c0_26, %c0_27] : memref<64x128xf32, #tpu.memory_space<vmem>>, vector<64x128xf32>
    tpu.vector_store %arg14[%c0_26, %c0_27], %55 {strides = array<i32>} : memref<64x128xf32, #tpu.memory_space<vmem>>, vector<64x128xf32>,
    %c0_28 = arith.constant 0 : index
    %c0_29 = arith.constant 0 : index
    %57 = vector.load %arg14[%c0_28, %c0_29] : memref<64x128xf32, #tpu.memory_space<vmem>>, vector<8x128xf32>
    %c8_30 = arith.constant 8 : index
    %c0_31 = arith.constant 0 : index
    %58 = vector.load %arg14[%c8_30, %c0_31] : memref<64x128xf32, #tpu.memory_space<vmem>>, vector<8x128xf32>
    %59 = arith.maximumf %57, %58 : vector<8x128xf32>
    %c16_32 = arith.constant 16 : index
    %c0_33 = arith.constant 0 : index
    %60 = vector.load %arg14[%c16_32, %c0_33] : memref<64x128xf32, #tpu.memory_space<vmem>>, vector<8x128xf32>
    %c24_34 = arith.constant 24 : index
    %c0_35 = arith.constant 0 : index
    %61 = vector.load %arg14[%c24_34, %c0_35] : memref<64x128xf32, #tpu.memory_space<vmem>>, vector<8x128xf32>
    %62 = arith.maximumf %60, %61 : vector<8x128xf32>
    %c32_36 = arith.constant 32 : index
    %c0_37 = arith.constant 0 : index
    %63 = vector.load %arg14[%c32_36, %c0_37] : memref<64x128xf32, #tpu.memory_space<vmem>>, vector<8x128xf32>
    %c40 = arith.constant 40 : index
    %c0_38 = arith.constant 0 : index
    %64 = vector.load %arg14[%c40, %c0_38] : memref<64x128xf32, #tpu.memory_space<vmem>>, vector<8x128xf32>
    %65 = arith.maximumf %63, %64 : vector<8x128xf32>
    %c48 = arith.constant 48 : index
    %c0_39 = arith.constant 0 : index
    %66 = vector.load %arg14[%c48, %c0_39] : memref<64x128xf32, #tpu.memory_space<vmem>>, vector<8x128xf32>
    %c56 = arith.constant 56 : index
    %c0_40 = arith.constant 0 : index
    %67 = vector.load %arg14[%c56, %c0_40] : memref<64x128xf32, #tpu.memory_space<vmem>>, vector<8x128xf32>
    %68 = arith.maximumf %66, %67 : vector<8x128xf32>
    %69 = tpu.concatenate %59, %62, %65, %68 in 1 : vector<8x128xf32>, vector<8x128xf32>, vector<8x128xf32>, vector<8x128xf32> -> vector<8x512xf32>
    %c0_41 = arith.constant 0 : index
    %c0_42 = arith.constant 0 : index
    %70 = vector.load %arg6[%c0_41, %c0_42] : memref<512x128xf32, #tpu.memory_space<vmem>>, vector<512x128xf32>
    %cst_43 = arith.constant dense<0.000000e+00> : vector<8x128xf32>
    %71 = tpu.matmul %69, %70, %cst_43 {dimension_numbers = #tpu.dot_dimension_numbers<[1], [0], [0], [1], [0, 0, 1, 1], [], []>} : vector<8x512xf32>, vector<512x128xf32>, vector<8x128xf32> -> vector<8x128xf32>
    %c0_44 = arith.constant 0 : index
    %c0_45 = arith.constant 0 : index
    %72 = vector.load %arg7[%c0_44, %c0_45] : memref<1x128xf32, #tpu.memory_space<vmem>>, vector<1x128xf32>
    %73 = vector.broadcast %72 : vector<1x128xf32> to vector<8x128xf32>
    %74 = arith.addf %71, %73 : vector<8x128xf32>
    %cst_46 = arith.constant 0.000000e+00 : f32
    %75 = vector.broadcast %cst_46 : f32 to vector<8x128xf32>
    %76 = arith.maximumf %74, %75 : vector<8x128xf32>
    %c0_47 = arith.constant 0 : index
    %c0_48 = arith.constant 0 : index
    %77 = vector.load %arg8[%c0_47, %c0_48] : memref<128x128xf32, #tpu.memory_space<vmem>>, vector<128x128xf32>
    %cst_49 = arith.constant dense<0.000000e+00> : vector<8x128xf32>
    %78 = tpu.matmul %76, %77, %cst_49 {dimension_numbers = #tpu.dot_dimension_numbers<[1], [0], [0], [1], [0, 0, 1, 1], [], []>} : vector<8x128xf32>, vector<128x128xf32>, vector<8x128xf32> -> vector<8x128xf32>
    %c0_50 = arith.constant 0 : index
    %c0_51 = arith.constant 0 : index
    %79 = vector.load %arg9[%c0_50, %c0_51] : memref<1x128xf32, #tpu.memory_space<vmem>>, vector<1x128xf32>
    %80 = vector.broadcast %79 : vector<1x128xf32> to vector<8x128xf32>
    %81 = arith.addf %78, %80 : vector<8x128xf32>
    %cst_52 = arith.constant 0.000000e+00 : f32
    %82 = vector.broadcast %cst_52 : f32 to vector<8x128xf32>
    %83 = arith.maximumf %81, %82 : vector<8x128xf32>
    %c0_53 = arith.constant 0 : index
    %c0_54 = arith.constant 0 : index
    %84 = vector.load %arg10[%c0_53, %c0_54] : memref<128x128xf32, #tpu.memory_space<vmem>>, vector<128x128xf32>
    %cst_55 = arith.constant dense<0.000000e+00> : vector<8x128xf32>
    %85 = tpu.matmul %83, %84, %cst_55 {dimension_numbers = #tpu.dot_dimension_numbers<[1], [0], [0], [1], [0, 0, 1, 1], [], []>} : vector<8x128xf32>, vector<128x128xf32>, vector<8x128xf32> -> vector<8x128xf32>
    %c0_56 = arith.constant 0 : index
    %c0_57 = arith.constant 0 : index
    %86 = vector.load %arg11[%c0_56, %c0_57] : memref<1x128xf32, #tpu.memory_space<vmem>>, vector<1x128xf32>
    %87 = vector.broadcast %86 : vector<1x128xf32> to vector<8x128xf32>
    %88 = arith.addf %85, %87 : vector<8x128xf32>
    %c0_58 = arith.constant 0 : index
    %c0_59 = arith.constant 0 : index
    %89 = vector.load %arg12[%c0_58, %c0_59] : memref<8x128xf32, #tpu.memory_space<vmem>>, vector<8x128xf32>
    tpu.vector_store %arg12[%c0_58, %c0_59], %88 {strides = array<i32>} : memref<8x128xf32, #tpu.memory_space<vmem>>, vector<8x128xf32>,
    return
  }
  func.func @transform_0(%arg0: i32) -> (i32, i32, i32) {
    %c0_i32 = arith.constant 0 : i32
    %c0_i32_0 = arith.constant 0 : i32
    %c0_i32_1 = arith.constant 0 : i32
    return %c0_i32, %arg0, %c0_i32_0 : i32, i32, i32
  }
  func.func @transform_1(%arg0: i32) -> (i32, i32) {
    %c0_i32 = arith.constant 0 : i32
    %c0_i32_0 = arith.constant 0 : i32
    %c0_i32_1 = arith.constant 0 : i32
    return %c0_i32, %c0_i32_0 : i32, i32
  }
  func.func @transform_2(%arg0: i32) -> (i32, i32) {
    %c0_i32 = arith.constant 0 : i32
    %c0_i32_0 = arith.constant 0 : i32
    %c0_i32_1 = arith.constant 0 : i32
    return %c0_i32, %c0_i32_0 : i32, i32
  }
  func.func @transform_3(%arg0: i32) -> (i32, i32) {
    %c0_i32 = arith.constant 0 : i32
    %c0_i32_0 = arith.constant 0 : i32
    %c0_i32_1 = arith.constant 0 : i32
    return %c0_i32, %c0_i32_0 : i32, i32
  }
  func.func @transform_4(%arg0: i32) -> (i32, i32) {
    %c0_i32 = arith.constant 0 : i32
    %c0_i32_0 = arith.constant 0 : i32
    %c0_i32_1 = arith.constant 0 : i32
    return %c0_i32, %c0_i32_0 : i32, i32
  }
  func.func @transform_5(%arg0: i32) -> (i32, i32) {
    %c0_i32 = arith.constant 0 : i32
    %c0_i32_0 = arith.constant 0 : i32
    %c0_i32_1 = arith.constant 0 : i32
    return %c0_i32, %c0_i32_0 : i32, i32
  }
  func.func @transform_6(%arg0: i32) -> (i32, i32) {
    %c0_i32 = arith.constant 0 : i32
    %c0_i32_0 = arith.constant 0 : i32
    %c0_i32_1 = arith.constant 0 : i32
    return %c0_i32, %c0_i32_0 : i32, i32
  }
  func.func @transform_7(%arg0: i32) -> (i32, i32) {
    %c0_i32 = arith.constant 0 : i32
    %c0_i32_0 = arith.constant 0 : i32
    %c0_i32_1 = arith.constant 0 : i32
    return %c0_i32, %c0_i32_0 : i32, i32
  }
  func.func @transform_8(%arg0: i32) -> (i32, i32) {
    %c0_i32 = arith.constant 0 : i32
    %c0_i32_0 = arith.constant 0 : i32
    %c0_i32_1 = arith.constant 0 : i32
    return %c0_i32, %c0_i32_0 : i32, i32
  }
  func.func @transform_9(%arg0: i32) -> (i32, i32) {
    %c0_i32 = arith.constant 0 : i32
    %c0_i32_0 = arith.constant 0 : i32
    %c0_i32_1 = arith.constant 0 : i32
    return %c0_i32, %c0_i32_0 : i32, i32
  }
  func.func @transform_10(%arg0: i32) -> (i32, i32) {
    %c0_i32 = arith.constant 0 : i32
    %c0_i32_0 = arith.constant 0 : i32
    %c0_i32_1 = arith.constant 0 : i32
    return %c0_i32, %c0_i32_0 : i32, i32
  }
  func.func @transform_11(%arg0: i32) -> (i32, i32) {
    %c0_i32 = arith.constant 0 : i32
    %c0_i32_0 = arith.constant 0 : i32
    return %arg0, %c0_i32 : i32, i32
  }
}

</mosaic_0001>

<llo_original>
// kernel: forward.1
$region0: #{forward.1}
  #allocation0 [shape = 'u32[]', space=smem, size = 0x4, offset = 0x4, fixed_abs, tag = 'smem constant byte address 0x4 - core index']
  #allocation1 [shape = 'u32[144,128]{1,0:T(1,128)}', space=vmem, size = 0x12000, scoped, tag = 'internal scratch']
  #allocation2 [shape = 'f32[96,128]{1,0:T(8,128)}', space=vmem, size = 0xc000, scoped, tag = 'scratch operand']
  #allocation3 [shape = 'f32[64,128]{1,0:T(8,128)}', space=vmem, size = 0x8000, scoped, tag = 'scratch operand']
  %s0 = inlined_call_operand.vmem [shape: f32[28,8,28], index: 0, kind: input, shape index: {}]
  %s1 = inlined_call_operand.vmem [shape: f32[140,256], index: 1, kind: input, shape index: {}]
  %s2 = inlined_call_operand.vmem [shape: f32[1,256], index: 2, kind: input, shape index: {}]
  %s3 = inlined_call_operand.hbm [shape: f32[640,256], index: 3, kind: input, shape index: {}]
  %s4 = inlined_call_operand.vmem [shape: f32[1,256], index: 4, kind: input, shape index: {}]
  %s5 = inlined_call_operand.hbm [shape: f32[512,128], index: 5, kind: input, shape index: {}]
  %s6 = inlined_call_operand.vmem [shape: f32[1,128], index: 6, kind: input, shape index: {}]
  %s7 = inlined_call_operand.vmem [shape: f32[128,128], index: 7, kind: input, shape index: {}]
  %s8 = inlined_call_operand.vmem [shape: f32[1,128], index: 8, kind: input, shape index: {}]
  %s9 = inlined_call_operand.hbm [shape: f32[128,128], index: 9, kind: input, shape index: {}]
  %s10 = inlined_call_operand.hbm [shape: f32[1,128], index: 10, kind: input, shape index: {}]
  %s11 = inlined_call_operand.vmem [shape: f32[8,128], index: 11, kind: output, shape index: {}]
  %s12 = sld [smem:[#allocation0]]
  $region70: #{forward.1} parent=0
    _
  %s14 = ssub.s32 1, %s12
  %s15 = scalar_select 0, %s14, %s12
  $region1: #{forward.1} parent=0
    #allocation4 [shape = 'u8[655360]{0}', space=vmem, size = 0xa0000, scoped, tag = 'input window, operand 3, single buffered']
    #allocation5 [shape = 's32[1]{0}', space=sflag, size = 0x4, scoped, tag = 'scoped memory for forward.1']
    #allocation6 [shape = 'u8[262144]{0}', space=vmem, size = 0x40000, scoped, tag = 'input window, operand 5, single buffered']
    #allocation7 [shape = 's32[1]{0}', space=sflag, size = 0x4, scoped, tag = 'scoped memory for forward.1']
    #allocation8 [shape = 'u8[65536]{0}', space=vmem, size = 0x10000, scoped, tag = 'input window, operand 9, single buffered']
    #allocation9 [shape = 'u8[512]{0}', space=vmem, size = 0x400, scoped, tag = 'input window, operand 10, single buffered']
    #allocation10 [shape = 's32[1]{0}', space=sflag, size = 0x4, scoped, tag = 'scoped memory for forward.1']
    %16 = vsyncpa [#allocation5], 0
    %17 = vsyncpa [#allocation7], 0
    %18 = vsyncpa [#allocation10], 0
    // Predicated region
    $region2: #{forward.1} parent=1 // pred_check
      _
    $region3: #{forward.1} parent=1 // pred_check_branch
      %20 = sbr.rel (0) target = $region5
    $region4: #{forward.1} parent=1 // pred_region
      _
    $region5: #{forward.1} parent=1 // pred_fallthru
      _
    // Predicated region
    $region6: #{forward.1} parent=1 // pred_check
      _
    $region7: #{forward.1} parent=1 // pred_check_branch
      %22 = sbr.rel (0) target = $region9
    $region8: #{forward.1} parent=1 // pred_region
      _
    $region9: #{forward.1} parent=1 // pred_fallthru
      _
    // Predicated region
    $region10: #{forward.1} parent=1 // pred_check
      _
    $region11: #{forward.1} parent=1 // pred_check_branch
      %24 = sbr.rel (0) target = $region13
    $region12: #{forward.1} parent=1 // pred_region
      _
    $region13: #{forward.1} parent=1 // pred_fallthru
      _
    // Predicated region
    $region14: #{forward.1} parent=1 // pred_check
      _
    $region15: #{forward.1} parent=1 // pred_check_branch
      %26 = sbr.rel (0) target = $region17
    $region16: #{forward.1} parent=1 // pred_region
      %s28 = ssub.s32 20480, 20480
      %29 = vsyncadd [#allocation5], %s28
      %s30 = sshll.u32 [#allocation4], 4
      %s31 = int_to_ptr.vmem [resolvable:$true] %s30
      %36 = dma.hbm_to_vmem [thread:$0]  %s3, 20480, %s31, [#allocation5], 256, 256, 16
    $region17: #{forward.1} parent=1 // pred_fallthru
      _
    // Predicated region
    $region18: #{forward.1} parent=1 // pred_check
      _
    $region19: #{forward.1} parent=1 // pred_check_branch
      %38 = sbr.rel (0) target = $region21
    $region20: #{forward.1} parent=1 // pred_region
      _
    $region21: #{forward.1} parent=1 // pred_fallthru
      _
    // Predicated region
    $region22: #{forward.1} parent=1 // pred_check
      _
    $region23: #{forward.1} parent=1 // pred_check_branch
      %40 = sbr.rel (0) target = $region25
    $region24: #{forward.1} parent=1 // pred_region
      %s42 = ssub.s32 8192, 8192
      %43 = vsyncadd [#allocation7], %s42
      %s44 = sshll.u32 [#allocation6], 4
      %s45 = int_to_ptr.vmem [resolvable:$true] %s44
      %50 = dma.hbm_to_vmem [thread:$0]  %s5, 8192, %s45, [#allocation7], 128, 128, 8
    $region25: #{forward.1} parent=1 // pred_fallthru
      _
    // Predicated region
    $region26: #{forward.1} parent=1 // pred_check
      _
    $region27: #{forward.1} parent=1 // pred_check_branch
      %52 = sbr.rel (0) target = $region29
    $region28: #{forward.1} parent=1 // pred_region
      _
    $region29: #{forward.1} parent=1 // pred_fallthru
      _
    // Predicated region
    $region30: #{forward.1} parent=1 // pred_check
      _
    $region31: #{forward.1} parent=1 // pred_check_branch
      %54 = sbr.rel (0) target = $region33
    $region32: #{forward.1} parent=1 // pred_region
      _
    $region33: #{forward.1} parent=1 // pred_fallthru
      _
    // Predicated region
    $region34: #{forward.1} parent=1 // pred_check
      _
    $region35: #{forward.1} parent=1 // pred_check_branch
      %56 = sbr.rel (0) target = $region37
    $region36: #{forward.1} parent=1 // pred_region
      _
    $region37: #{forward.1} parent=1 // pred_fallthru
      _
    // Predicated region
    $region38: #{forward.1} parent=1 // pred_check
      _
    $region39: #{forward.1} parent=1 // pred_check_branch
      %58 = sbr.rel (0) target = $region41
    $region40: #{forward.1} parent=1 // pred_region
      %s60 = ssub.s32 2048, 2048
      %61 = vsyncadd [#allocation7], %s60
      %s62 = sshll.u32 [#allocation8], 4
      %s63 = int_to_ptr.vmem [resolvable:$true] %s62
      %68 = dma.hbm_to_vmem [thread:$0]  %s9, 2048, %s63, [#allocation7], 128, 128, 8
    $region41: #{forward.1} parent=1 // pred_fallthru
      _
    // Predicated region
    $region42: #{forward.1} parent=1 // pred_check
      _
    $region43: #{forward.1} parent=1 // pred_check_branch
      %70 = sbr.rel (0) target = $region45
    $region44: #{forward.1} parent=1 // pred_region
      %s72 = ssub.s32 16, 16
      %73 = vsyncadd [#allocation10], %s72
      %s75 = sshll.u32 [#allocation9], 4
      %s76 = int_to_ptr.vmem [resolvable:$true] %s75
      %78 = dma.hbm_to_vmem [thread:$0]  %s10, 16, %s76, [#allocation10]
    $region45: #{forward.1} parent=1 // pred_fallthru
      _
    // Predicated region
    $region46: #{forward.1} parent=1 // pred_check
      _
    $region47: #{forward.1} parent=1 // pred_check_branch
      %80 = sbr.rel (0) target = $region49
    $region48: #{forward.1} parent=1 // pred_region
      %81 = dma.done [#allocation5], 20480
    $region49: #{forward.1} parent=1 // pred_fallthru
      _
    // Predicated region
    $region50: #{forward.1} parent=1 // pred_check
      _
    $region51: #{forward.1} parent=1 // pred_check_branch
      %83 = sbr.rel (0) target = $region53
    $region52: #{forward.1} parent=1 // pred_region
      %84 = dma.done [#allocation7], 8192
    $region53: #{forward.1} parent=1 // pred_fallthru
      _
    // Predicated region
    $region54: #{forward.1} parent=1 // pred_check
      _
    $region55: #{forward.1} parent=1 // pred_check_branch
      %86 = sbr.rel (0) target = $region57
    $region56: #{forward.1} parent=1 // pred_region
      %87 = dma.done [#allocation7], 2048
    $region57: #{forward.1} parent=1 // pred_fallthru
      _
    // Predicated region
    $region58: #{forward.1} parent=1 // pred_check
      _
    $region59: #{forward.1} parent=1 // pred_check_branch
      %89 = sbr.rel (0) target = $region61
    $region60: #{forward.1} parent=1 // pred_region
      %90 = dma.done [#allocation10], 16
    $region61: #{forward.1} parent=1 // pred_fallthru
      _
    %v91 = vld [vmem:[%s0] sm:$0xff]
    %v92 = vld [vmem:[%s0 + $0x8] sm:$0xff]
    %v93 = vld [vmem:[%s0 + $0x10] sm:$0xff]
    %v94 = vld [vmem:[%s0 + $0x18] sm:$0xff]
    %v95 = vld [vmem:[%s0 + $0x20] sm:$0xff]
    %v96 = vld [vmem:[%s0 + $0x28] sm:$0xff]
    %v97 = vld [vmem:[%s0 + $0x30] sm:$0xff]
    %v98 = vld [vmem:[%s0 + $0x38] sm:$0xff]
    %v99 = vld [vmem:[%s0 + $0x40] sm:$0xff]
    %v100 = vld [vmem:[%s0 + $0x48] sm:$0xff]
    %v101 = vld [vmem:[%s0 + $0x50] sm:$0xff]
    %v102 = vld [vmem:[%s0 + $0x58] sm:$0xff]
    %v103 = vld [vmem:[%s0 + $0x60] sm:$0xff]
    %v104 = vld [vmem:[%s0 + $0x68] sm:$0xff]
    %v105 = vld [vmem:[%s0 + $0x70] sm:$0xff]
    %v106 = vld [vmem:[%s0 + $0x78] sm:$0xff]
    %v107 = vld [vmem:[%s0 + $0x80] sm:$0xff]
    %v108 = vld [vmem:[%s0 + $0x88] sm:$0xff]
    %v109 = vld [vmem:[%s0 + $0x90] sm:$0xff]
    %v110 = vld [vmem:[%s0 + $0x98] sm:$0xff]
    %v111 = vld [vmem:[%s0 + $0xa0] sm:$0xff]
    %v112 = vld [vmem:[%s0 + $0xa8] sm:$0xff]
    %v113 = vld [vmem:[%s0 + $0xb0] sm:$0xff]
    %v114 = vld [vmem:[%s0 + $0xb8] sm:$0xff]
    %v115 = vld [vmem:[%s0 + $0xc0] sm:$0xff]
    %v116 = vld [vmem:[%s0 + $0xc8] sm:$0xff]
    %v117 = vld [vmem:[%s0 + $0xd0] sm:$0xff]
    %v118 = vld [vmem:[%s0 + $0xd8] sm:$0xff]
    %131 = vrot.lane.b32.xlu0 %v92, 28
    %v132 = vpop.permute.xlu0 %131
    %133 = vrot.lane.b32.xlu0 %v94, 28
    %v134 = vpop.permute.xlu0 %133
    %135 = vrot.lane.b32.xlu0 %v96, 28
    %v136 = vpop.permute.xlu0 %135
    %137 = vrot.lane.b32.xlu0 %v98, 28
    %v138 = vpop.permute.xlu0 %137
    %139 = vrot.lane.b32.xlu0 %v100, 28
    %v140 = vpop.permute.xlu0 %139
    %141 = vrot.lane.b32.xlu0 %v102, 28
    %v142 = vpop.permute.xlu0 %141
    %143 = vrot.lane.b32.xlu0 %v104, 28
    %v144 = vpop.permute.xlu0 %143
    %145 = vrot.lane.b32.xlu0 %v106, 28
    %v146 = vpop.permute.xlu0 %145
    %147 = vrot.lane.b32.xlu0 %v108, 28
    %v148 = vpop.permute.xlu0 %147
    %149 = vrot.lane.b32.xlu0 %v110, 28
    %v150 = vpop.permute.xlu0 %149
    %151 = vrot.lane.b32.xlu0 %v112, 28
    %v152 = vpop.permute.xlu0 %151
    %153 = vrot.lane.b32.xlu0 %v114, 28
    %v154 = vpop.permute.xlu0 %153
    %179 = vrot.lane.b32.xlu0 %v93, 56
    %v180 = vpop.permute.xlu0 %179
    %181 = vrot.lane.b32.xlu0 %v95, 56
    %v182 = vpop.permute.xlu0 %181
    %183 = vrot.lane.b32.xlu0 %v97, 56
    %v184 = vpop.permute.xlu0 %183
    %185 = vrot.lane.b32.xlu0 %v99, 56
    %v186 = vpop.permute.xlu0 %185
    %187 = vrot.lane.b32.xlu0 %v101, 56
    %v188 = vpop.permute.xlu0 %187
    %189 = vrot.lane.b32.xlu0 %v103, 56
    %v190 = vpop.permute.xlu0 %189
    %191 = vrot.lane.b32.xlu0 %v105, 56
    %v192 = vpop.permute.xlu0 %191
    %193 = vrot.lane.b32.xlu0 %v107, 56
    %v194 = vpop.permute.xlu0 %193
    %195 = vrot.lane.b32.xlu0 %v109, 56
    %v196 = vpop.permute.xlu0 %195
    %197 = vrot.lane.b32.xlu0 %v111, 56
    %v198 = vpop.permute.xlu0 %197
    %199 = vrot.lane.b32.xlu0 %v113, 56
    %v200 = vpop.permute.xlu0 %199
    %201 = vrot.lane.b32.xlu0 %v115, 56
    %v202 = vpop.permute.xlu0 %201
    %216 = vrot.lane.b32.xlu0 %v94, 84
    %v217 = vpop.permute.xlu0 %216
    %218 = vrot.lane.b32.xlu0 %v96, 84
    %v219 = vpop.permute.xlu0 %218
    %220 = vrot.lane.b32.xlu0 %v98, 84
    %v221 = vpop.permute.xlu0 %220
    %222 = vrot.lane.b32.xlu0 %v100, 84
    %v223 = vpop.permute.xlu0 %222
    %224 = vrot.lane.b32.xlu0 %v102, 84
    %v225 = vpop.permute.xlu0 %224
    %226 = vrot.lane.b32.xlu0 %v104, 84
    %v227 = vpop.permute.xlu0 %226
    %228 = vrot.lane.b32.xlu0 %v106, 84
    %v229 = vpop.permute.xlu0 %228
    %230 = vrot.lane.b32.xlu0 %v108, 84
    %v231 = vpop.permute.xlu0 %230
    %232 = vrot.lane.b32.xlu0 %v110, 84
    %v233 = vpop.permute.xlu0 %232
    %234 = vrot.lane.b32.xlu0 %v112, 84
    %v235 = vpop.permute.xlu0 %234
    %236 = vrot.lane.b32.xlu0 %v114, 84
    %v237 = vpop.permute.xlu0 %236
    %238 = vrot.lane.b32.xlu0 %v116, 84
    %v239 = vpop.permute.xlu0 %238
    %253 = vrot.lane.b32.xlu0 %v95, 112
    %v254 = vpop.permute.xlu0 %253
    %255 = vrot.lane.b32.xlu0 %v97, 112
    %v256 = vpop.permute.xlu0 %255
    %257 = vrot.lane.b32.xlu0 %v99, 112
    %v258 = vpop.permute.xlu0 %257
    %259 = vrot.lane.b32.xlu0 %v101, 112
    %v260 = vpop.permute.xlu0 %259
    %261 = vrot.lane.b32.xlu0 %v103, 112
    %v262 = vpop.permute.xlu0 %261
    %263 = vrot.lane.b32.xlu0 %v105, 112
    %v264 = vpop.permute.xlu0 %263
    %265 = vrot.lane.b32.xlu0 %v107, 112
    %v266 = vpop.permute.xlu0 %265
    %267 = vrot.lane.b32.xlu0 %v109, 112
    %v268 = vpop.permute.xlu0 %267
    %269 = vrot.lane.b32.xlu0 %v111, 112
    %v270 = vpop.permute.xlu0 %269
    %271 = vrot.lane.b32.xlu0 %v113, 112
    %v272 = vpop.permute.xlu0 %271
    %273 = vrot.lane.b32.xlu0 %v115, 112
    %v274 = vpop.permute.xlu0 %273
    %275 = vrot.lane.b32.xlu0 %v117, 112
    %v276 = vpop.permute.xlu0 %275
    %vm289 = vcmask 228352
    %v290 = vsel %vm289, %v91, %v132
    %v291 = vsel %vm289, %v93, %v134
    %v292 = vsel %vm289, %v95, %v136
    %v293 = vsel %vm289, %v97, %v138
    %v294 = vsel %vm289, %v99, %v140
    %v295 = vsel %vm289, %v101, %v142
    %v296 = vsel %vm289, %v103, %v144
    %v297 = vsel %vm289, %v105, %v146
    %v298 = vsel %vm289, %v107, %v148
    %v299 = vsel %vm289, %v109, %v150
    %v300 = vsel %vm289, %v111, %v152
    %v301 = vsel %vm289, %v113, %v154
    %vm302 = vcmask 457728
    %v303 = vsel %vm302, %v290, %v180
    %v304 = vsel %vm302, %v291, %v182
    %v305 = vsel %vm302, %v292, %v184
    %v306 = vsel %vm302, %v293, %v186
    %v307 = vsel %vm302, %v294, %v188
    %v308 = vsel %vm302, %v295, %v190
    %v309 = vsel %vm302, %v296, %v192
    %v310 = vsel %vm302, %v297, %v194
    %v311 = vsel %vm302, %v298, %v196
    %v312 = vsel %vm302, %v299, %v198
    %v313 = vsel %vm302, %v300, %v200
    %v314 = vsel %vm302, %v301, %v202
    %vm315 = vcmask 687104
    %v316 = vsel %vm315, %v303, %v217
    %v317 = vsel %vm315, %v304, %v219
    %v318 = vsel %vm315, %v305, %v221
    %v319 = vsel %vm315, %v306, %v223
    %v320 = vsel %vm315, %v307, %v225
    %v321 = vsel %vm315, %v308, %v227
    %v322 = vsel %vm315, %v309, %v229
    %v323 = vsel %vm315, %v310, %v231
    %v324 = vsel %vm315, %v311, %v233
    %v325 = vsel %vm315, %v312, %v235
    %v326 = vsel %vm315, %v313, %v237
    %v327 = vsel %vm315, %v314, %v239
    %vm328 = vcmask 916480
    %v329 = vsel %vm328, %v316, %v254
    %v330 = vsel %vm328, %v317, %v256
    %v331 = vsel %vm328, %v318, %v258
    %v332 = vsel %vm328, %v319, %v260
    %v333 = vsel %vm328, %v320, %v262
    %v334 = vsel %vm328, %v321, %v264
    %v335 = vsel %vm328, %v322, %v266
    %v336 = vsel %vm328, %v323, %v268
    %v337 = vsel %vm328, %v324, %v270
    %v338 = vsel %vm328, %v325, %v272
    %v339 = vsel %vm328, %v326, %v274
    %v340 = vsel %vm328, %v327, %v276
    %v341 = vld [vmem:[%s1] sm:$0xff]
    %v342 = vld [vmem:[%s1 + $0x8] sm:$0xff]
    %v343 = vld [vmem:[%s1 + $0x10] sm:$0xff]
    %v344 = vld [vmem:[%s1 + $0x18] sm:$0xff]
    %v345 = vld [vmem:[%s1 + $0x20] sm:$0xff]
    %v346 = vld [vmem:[%s1 + $0x28] sm:$0xff]
    %v347 = vld [vmem:[%s1 + $0x30] sm:$0xff]
    %v348 = vld [vmem:[%s1 + $0x38] sm:$0xff]
    %v349 = vld [vmem:[%s1 + $0x40] sm:$0xff]
    %v350 = vld [vmem:[%s1 + $0x48] sm:$0xff]
    %v351 = vld [vmem:[%s1 + $0x50] sm:$0xff]
    %v352 = vld [vmem:[%s1 + $0x58] sm:$0xff]
    %v353 = vld [vmem:[%s1 + $0x60] sm:$0xff]
    %v354 = vld [vmem:[%s1 + $0x68] sm:$0xff]
    %v355 = vld [vmem:[%s1 + $0x70] sm:$0xff]
    %v356 = vld [vmem:[%s1 + $0x78] sm:$0xff]
    %v357 = vld [vmem:[%s1 + $0x80] sm:$0xff]
    %v358 = vld [vmem:[%s1 + $0x88] sm:$0xff]
    %v359 = vld [vmem:[%s1 + $0x90] sm:$0xff]
    %v360 = vld [vmem:[%s1 + $0x98] sm:$0xff]
    %v361 = vld [vmem:[%s1 + $0xa0] sm:$0xff]
    %v362 = vld [vmem:[%s1 + $0xa8] sm:$0xff]
    %v363 = vld [vmem:[%s1 + $0xb0] sm:$0xff]
    %v364 = vld [vmem:[%s1 + $0xb8] sm:$0xff]
    %v365 = vld [vmem:[%s1 + $0xc0] sm:$0xff]
    %v366 = vld [vmem:[%s1 + $0xc8] sm:$0xff]
    %v367 = vld [vmem:[%s1 + $0xd0] sm:$0xff]
    %v368 = vld [vmem:[%s1 + $0xd8] sm:$0xff]
    %v369 = vld [vmem:[%s1 + $0xe0] sm:$0xff]
    %v370 = vld [vmem:[%s1 + $0xe8] sm:$0xff]
    %v371 = vld [vmem:[%s1 + $0xf0] sm:$0xff]
    %v372 = vld [vmem:[%s1 + $0xf8] sm:$0xff]
    %v373 = vld [vmem:[%s1 + $0x100] sm:$0xff]
    %v374 = vld [vmem:[%s1 + $0x108] sm:$0xff]
    %v375 = vld [vmem:[%s1 + $0x110] sm:$0xf]
    %v376 = vld [vmem:[%s1 + $0x118] sm:$0xf]
    %v377 = vld [vmem:[%s2] sm:$0x3]
    %v379 = vlaneseq
    %v380 = vshrl.u32 %v379, 7
    %v381 = vsub.s32 0, %v380
    %v382 = vrot.slane %v377, %v381
    %v383 = vlaneseq
    %v384 = vshrl.u32 %v383, 7
    %v385 = vsub.s32 1, %v384
    %v386 = vrot.slane %v377, %v385
    %vm389 = vcmask 97280
    %v390 = vsel %vm389, %v254, 0
    %v392 = vsel %vm389, %v256, 0
    %v394 = vsel %vm389, %v258, 0
    %v396 = vsel %vm389, %v260, 0
    %v398 = vsel %vm389, %v262, 0
    %v400 = vsel %vm389, %v264, 0
    %v402 = vsel %vm389, %v266, 0
    %v404 = vsel %vm389, %v268, 0
    %v406 = vsel %vm389, %v270, 0
    %v408 = vsel %vm389, %v272, 0
    %v410 = vsel %vm389, %v274, 0
    %v412 = vsel %vm389, %v276, 0
    %vm414 = vcmask 1043456
    %v416 = vsel %vm414, %v375, 0
    %v419 = vsel %vm414, %v376, 0
    %421 = vmatprep.subr.mxu0 %v342
    %422 = vmatpush1.msra.mxu0 %v341
    %423 = vmatprep.subr.mxu0 %v344
    %424 = vmatpush1.msra.mxu0 %v343
    %425 = vmatprep.subr.mxu0 %v346
    %426 = vmatpush1.msra.mxu0 %v345
    %427 = vmatprep.subr.mxu0 %v348
    %428 = vmatpush1.msra.mxu0 %v347
    %429 = vmatprep.subr.mxu0 %v350
    %430 = vmatpush1.msra.mxu0 %v349
    %431 = vmatprep.subr.mxu0 %v352
    %432 = vmatpush1.msra.mxu0 %v351
    %433 = vmatprep.subr.mxu0 %v354
    %434 = vmatpush1.msra.mxu0 %v353
    %435 = vmatprep.subr.mxu0 %v356
    %436 = vmatpush1.msra.mxu0 %v355
    %437 = vmatprep.subr.mxu0 %v358
    %438 = vmatpush1.msra.mxu0 %v357
    %439 = vmatprep.subr.mxu0 %v360
    %440 = vmatpush1.msra.mxu0 %v359
    %441 = vmatprep.subr.mxu0 %v362
    %442 = vmatpush1.msra.mxu0 %v361
    %443 = vmatprep.subr.mxu0 %v364
    %444 = vmatpush1.msra.mxu0 %v363
    %445 = vmatprep.subr.mxu0 %v366
    %446 = vmatpush1.msra.mxu0 %v365
    %447 = vmatprep.subr.mxu0 %v368
    %448 = vmatpush1.msra.mxu0 %v367
    %449 = vmatprep.subr.mxu0 %v370
    %450 = vmatpush1.msra.mxu0 %v369
    %451 = vmatprep.subr.mxu0 %v372
    %452 = vmatpush1.msra.mxu0 %v371
    %453 = vmatprep.subr.mxu0 %v374
    %454 = vmatpush1.msra.mxu0 %v373
    %455 = vmatprep.subr.mxu0 %v419
    %456 = vmatpush1.msra.mxu0 %v416
    %457 = vmatprep.subr.mxu0 0.0
    %458 = vmatpush1.msra.mxu0 0.0
    %459 = vmatprep.subr.mxu0 0.0
    %460 = vmatpush1.msra.mxu0 0.0
    %461 = vmatprep.subr.mxu0 0.0
    %462 = vmatpush1.msra.mxu0 0.0
    %463 = vmatprep.subr.mxu0 0.0
    %464 = vmatpush1.msra.mxu0 0.0
    %465 = vmatprep.subr.mxu0 0.0
    %466 = vmatpush1.msra.mxu0 0.0
    %467 = vmatprep.subr.mxu0 0.0
    %468 = vmatpush1.msra.mxu0 0.0
    %469 = vmatprep.subr.mxu0 0.0
    %470 = vmatpush1.msra.mxu0 0.0
    %471 = vmatprep.subr.mxu0 0.0
    %472 = vmatpush1.msra.mxu0 0.0
    %473 = vmatprep.subr.mxu0 0.0
    %474 = vmatpush1.msra.mxu0 0.0
    %475 = vmatprep.subr.mxu0 0.0
    %476 = vmatpush1.msra.mxu0 0.0
    %477 = vmatprep.subr.mxu0 0.0
    %478 = vmatpush1.msra.mxu0 0.0
    %479 = vmatprep.subr.mxu0 0.0
    %480 = vmatpush1.msra.mxu0 0.0
    %481 = vmatprep.subr.mxu0 0.0
    %482 = vmatpush1.msra.mxu0 0.0
    %483 = vmatprep.subr.mxu0 0.0
    %484 = vmatpush1.msra.mxu0 0.0
    %485 = vmatprep.mubr.f32.mxu0 %v390
    %486 = vmatmul.mubr.f32.gmra.mrb[0].mxu0 %v329
    %v487 = vpop.f32.mrb[0].mxu0
    %v488 = vadd.f32 %v382, %v487
    %v489 = vpop.f32.mrb[0].mxu0
    %v490 = vadd.f32 %v386, %v489
    %491 = vmatprep.mubr.f32.mxu0 %v392
    %492 = vmatmul.mubr.f32.gmra.mrb[0].mxu0 %v330
    %v493 = vpop.f32.mrb[0].mxu0
    %v494 = vadd.f32 %v382, %v493
    %v495 = vpop.f32.mrb[0].mxu0
    %v496 = vadd.f32 %v386, %v495
    %497 = vmatprep.mubr.f32.mxu0 %v394
    %498 = vmatmul.mubr.f32.gmra.mrb[0].mxu0 %v331
    %v499 = vpop.f32.mrb[0].mxu0
    %v500 = vadd.f32 %v382, %v499
    %v501 = vpop.f32.mrb[0].mxu0
    %v502 = vadd.f32 %v386, %v501
    %503 = vmatprep.mubr.f32.mxu0 %v396
    %504 = vmatmul.mubr.f32.gmra.mrb[0].mxu0 %v332
    %v505 = vpop.f32.mrb[0].mxu0
    %v506 = vadd.f32 %v382, %v505
    %v507 = vpop.f32.mrb[0].mxu0
    %v508 = vadd.f32 %v386, %v507
    %509 = vmatprep.mubr.f32.mxu0 %v398
    %510 = vmatmul.mubr.f32.gmra.mrb[0].mxu0 %v333
    %v511 = vpop.f32.mrb[0].mxu0
    %v512 = vadd.f32 %v382, %v511
    %v513 = vpop.f32.mrb[0].mxu0
    %v514 = vadd.f32 %v386, %v513
    %515 = vmatprep.mubr.f32.mxu0 %v400
    %516 = vmatmul.mubr.f32.gmra.mrb[0].mxu0 %v334
    %v517 = vpop.f32.mrb[0].mxu0
    %v518 = vadd.f32 %v382, %v517
    %v519 = vpop.f32.mrb[0].mxu0
    %v520 = vadd.f32 %v386, %v519
    %521 = vmatprep.mubr.f32.mxu0 %v402
    %522 = vmatmul.mubr.f32.gmra.mrb[0].mxu0 %v335
    %v523 = vpop.f32.mrb[0].mxu0
    %v524 = vadd.f32 %v382, %v523
    %v525 = vpop.f32.mrb[0].mxu0
    %v526 = vadd.f32 %v386, %v525
    %527 = vmatprep.mubr.f32.mxu0 %v404
    %528 = vmatmul.mubr.f32.gmra.mrb[0].mxu0 %v336
    %v529 = vpop.f32.mrb[0].mxu0
    %v530 = vadd.f32 %v382, %v529
    %v531 = vpop.f32.mrb[0].mxu0
    %v532 = vadd.f32 %v386, %v531
    %533 = vmatprep.mubr.f32.mxu0 %v406
    %534 = vmatmul.mubr.f32.gmra.mrb[0].mxu0 %v337
    %v535 = vpop.f32.mrb[0].mxu0
    %v536 = vadd.f32 %v382, %v535
    %v537 = vpop.f32.mrb[0].mxu0
    %v538 = vadd.f32 %v386, %v537
    %539 = vmatprep.mubr.f32.mxu0 %v408
    %540 = vmatmul.mubr.f32.gmra.mrb[0].mxu0 %v338
    %v541 = vpop.f32.mrb[0].mxu0
    %v542 = vadd.f32 %v382, %v541
    %v543 = vpop.f32.mrb[0].mxu0
    %v544 = vadd.f32 %v386, %v543
    %545 = vmatprep.mubr.f32.mxu0 %v410
    %546 = vmatmul.mubr.f32.gmra.mrb[0].mxu0 %v339
    %v547 = vpop.f32.mrb[0].mxu0
    %v548 = vadd.f32 %v382, %v547
    %v549 = vpop.f32.mrb[0].mxu0
    %v550 = vadd.f32 %v386, %v549
    %551 = vmatprep.mubr.f32.mxu0 %v412
    %552 = vmatmul.mubr.f32.gmra.mrb[0].mxu0 %v340
    %v553 = vpop.f32.mrb[0].mxu0
    %v554 = vadd.f32 %v382, %v553
    %v555 = vpop.f32.mrb[0].mxu0
    %v556 = vadd.f32 %v386, %v555
    %557 = vdwg.mxu0
    %v558 = vmax.f32 %v488, %v490
    %v559 = vmax.f32 %v494, %v496
    %v560 = vmax.f32 %v500, %v502
    %v561 = vmax.f32 %v506, %v508
    %v562 = vmax.f32 %v512, %v514
    %v563 = vmax.f32 %v518, %v520
    %v564 = vmax.f32 %v524, %v526
    %v565 = vmax.f32 %v530, %v532
    %v566 = vmax.f32 %v536, %v538
    %v567 = vmax.f32 %v542, %v544
    %v568 = vmax.f32 %v548, %v550
    %v569 = vmax.f32 %v554, %v556
    %570 = vrot.lane.b32.xlu0 %v93, 28
    %v571 = vpop.permute.xlu0 %570
    %572 = vrot.lane.b32.xlu0 %v95, 28
    %v573 = vpop.permute.xlu0 %572
    %574 = vrot.lane.b32.xlu0 %v97, 28
    %v575 = vpop.permute.xlu0 %574
    %576 = vrot.lane.b32.xlu0 %v99, 28
    %v577 = vpop.permute.xlu0 %576
    %578 = vrot.lane.b32.xlu0 %v101, 28
    %v579 = vpop.permute.xlu0 %578
    %580 = vrot.lane.b32.xlu0 %v103, 28
    %v581 = vpop.permute.xlu0 %580
    %582 = vrot.lane.b32.xlu0 %v105, 28
    %v583 = vpop.permute.xlu0 %582
    %584 = vrot.lane.b32.xlu0 %v107, 28
    %v585 = vpop.permute.xlu0 %584
    %586 = vrot.lane.b32.xlu0 %v109, 28
    %v587 = vpop.permute.xlu0 %586
    %588 = vrot.lane.b32.xlu0 %v111, 28
    %v589 = vpop.permute.xlu0 %588
    %590 = vrot.lane.b32.xlu0 %v113, 28
    %v591 = vpop.permute.xlu0 %590
    %592 = vrot.lane.b32.xlu0 %v115, 28
    %v593 = vpop.permute.xlu0 %592
    %606 = vrot.lane.b32.xlu0 %v94, 56
    %v607 = vpop.permute.xlu0 %606
    %608 = vrot.lane.b32.xlu0 %v96, 56
    %v609 = vpop.permute.xlu0 %608
    %610 = vrot.lane.b32.xlu0 %v98, 56
    %v611 = vpop.permute.xlu0 %610
    %612 = vrot.lane.b32.xlu0 %v100, 56
    %v613 = vpop.permute.xlu0 %612
    %614 = vrot.lane.b32.xlu0 %v102, 56
    %v615 = vpop.permute.xlu0 %614
    %616 = vrot.lane.b32.xlu0 %v104, 56
    %v617 = vpop.permute.xlu0 %616
    %618 = vrot.lane.b32.xlu0 %v106, 56
    %v619 = vpop.permute.xlu0 %618
    %620 = vrot.lane.b32.xlu0 %v108, 56
    %v621 = vpop.permute.xlu0 %620
    %622 = vrot.lane.b32.xlu0 %v110, 56
    %v623 = vpop.permute.xlu0 %622
    %624 = vrot.lane.b32.xlu0 %v112, 56
    %v625 = vpop.permute.xlu0 %624
    %626 = vrot.lane.b32.xlu0 %v114, 56
    %v627 = vpop.permute.xlu0 %626
    %628 = vrot.lane.b32.xlu0 %v116, 56
    %v629 = vpop.permute.xlu0 %628
    %642 = vrot.lane.b32.xlu0 %v95, 84
    %v643 = vpop.permute.xlu0 %642
    %644 = vrot.lane.b32.xlu0 %v97, 84
    %v645 = vpop.permute.xlu0 %644
    %646 = vrot.lane.b32.xlu0 %v99, 84
    %v647 = vpop.permute.xlu0 %646
    %648 = vrot.lane.b32.xlu0 %v101, 84
    %v649 = vpop.permute.xlu0 %648
    %650 = vrot.lane.b32.xlu0 %v103, 84
    %v651 = vpop.permute.xlu0 %650
    %652 = vrot.lane.b32.xlu0 %v105, 84
    %v653 = vpop.permute.xlu0 %652
    %654 = vrot.lane.b32.xlu0 %v107, 84
    %v655 = vpop.permute.xlu0 %654
    %656 = vrot.lane.b32.xlu0 %v109, 84
    %v657 = vpop.permute.xlu0 %656
    %658 = vrot.lane.b32.xlu0 %v111, 84
    %v659 = vpop.permute.xlu0 %658
    %660 = vrot.lane.b32.xlu0 %v113, 84
    %v661 = vpop.permute.xlu0 %660
    %662 = vrot.lane.b32.xlu0 %v115, 84
    %v663 = vpop.permute.xlu0 %662
    %664 = vrot.lane.b32.xlu0 %v117, 84
    %v665 = vpop.permute.xlu0 %664
    %679 = vrot.lane.b32.xlu0 %v96, 112
    %v680 = vpop.permute.xlu0 %679
    %681 = vrot.lane.b32.xlu0 %v98, 112
    %v682 = vpop.permute.xlu0 %681
    %683 = vrot.lane.b32.xlu0 %v100, 112
    %v684 = vpop.permute.xlu0 %683
    %685 = vrot.lane.b32.xlu0 %v102, 112
    %v686 = vpop.permute.xlu0 %685
    %687 = vrot.lane.b32.xlu0 %v104, 112
    %v688 = vpop.permute.xlu0 %687
    %689 = vrot.lane.b32.xlu0 %v106, 112
    %v690 = vpop.permute.xlu0 %689
    %691 = vrot.lane.b32.xlu0 %v108, 112
    %v692 = vpop.permute.xlu0 %691
    %693 = vrot.lane.b32.xlu0 %v110, 112
    %v694 = vpop.permute.xlu0 %693
    %695 = vrot.lane.b32.xlu0 %v112, 112
    %v696 = vpop.permute.xlu0 %695
    %697 = vrot.lane.b32.xlu0 %v114, 112
    %v698 = vpop.permute.xlu0 %697
    %699 = vrot.lane.b32.xlu0 %v116, 112
    %v700 = vpop.permute.xlu0 %699
    %701 = vrot.lane.b32.xlu0 %v118, 112
    %v702 = vpop.permute.xlu0 %701
    %v715 = vsel %vm289, %v92, %v571
    %v716 = vsel %vm289, %v94, %v573
    %v717 = vsel %vm289, %v96, %v575
    %v718 = vsel %vm289, %v98, %v577
    %v719 = vsel %vm289, %v100, %v579
    %v720 = vsel %vm289, %v102, %v581
    %v721 = vsel %vm289, %v104, %v583
    %v722 = vsel %vm289, %v106, %v585
    %v723 = vsel %vm289, %v108, %v587
    %v724 = vsel %vm289, %v110, %v589
    %v725 = vsel %vm289, %v112, %v591
    %v726 = vsel %vm289, %v114, %v593
    %v727 = vsel %vm302, %v715, %v607
    %v728 = vsel %vm302, %v716, %v609
    %v729 = vsel %vm302, %v717, %v611
    %v730 = vsel %vm302, %v718, %v613
    %v731 = vsel %vm302, %v719, %v615
    %v732 = vsel %vm302, %v720, %v617
    %v733 = vsel %vm302, %v721, %v619
    %v734 = vsel %vm302, %v722, %v621
    %v735 = vsel %vm302, %v723, %v623
    %v736 = vsel %vm302, %v724, %v625
    %v737 = vsel %vm302, %v725, %v627
    %v738 = vsel %vm302, %v726, %v629
    %v739 = vsel %vm315, %v727, %v643
    %v740 = vsel %vm315, %v728, %v645
    %v741 = vsel %vm315, %v729, %v647
    %v742 = vsel %vm315, %v730, %v649
    %v743 = vsel %vm315, %v731, %v651
    %v744 = vsel %vm315, %v732, %v653
    %v745 = vsel %vm315, %v733, %v655
    %v746 = vsel %vm315, %v734, %v657
    %v747 = vsel %vm315, %v735, %v659
    %v748 = vsel %vm315, %v736, %v661
    %v749 = vsel %vm315, %v737, %v663
    %v750 = vsel %vm315, %v738, %v665
    %v751 = vsel %vm328, %v739, %v680
    %v752 = vsel %vm328, %v740, %v682
    %v753 = vsel %vm328, %v741, %v684
    %v754 = vsel %vm328, %v742, %v686
    %v755 = vsel %vm328, %v743, %v688
    %v756 = vsel %vm328, %v744, %v690
    %v757 = vsel %vm328, %v745, %v692
    %v758 = vsel %vm328, %v746, %v694
    %v759 = vsel %vm328, %v747, %v696
    %v760 = vsel %vm328, %v748, %v698
    %v761 = vsel %vm328, %v749, %v700
    %v762 = vsel %vm328, %v750, %v702
    %v763 = vsel %vm389, %v680, 0
    %v765 = vsel %vm389, %v682, 0
    %v767 = vsel %vm389, %v684, 0
    %v769 = vsel %vm389, %v686, 0
    %v771 = vsel %vm389, %v688, 0
    %v773 = vsel %vm389, %v690, 0
    %v775 = vsel %vm389, %v692, 0
    %v777 = vsel %vm389, %v694, 0
    %v779 = vsel %vm389, %v696, 0
    %v781 = vsel %vm389, %v698, 0
    %v783 = vsel %vm389, %v700, 0
    %v785 = vsel %vm389, %v702, 0
    %787 = vmatprep.subr.mxu0 %v342
    %788 = vmatpush1.msra.mxu0 %v341
    %789 = vmatprep.subr.mxu0 %v344
    %790 = vmatpush1.msra.mxu0 %v343
    %791 = vmatprep.subr.mxu0 %v346
    %792 = vmatpush1.msra.mxu0 %v345
    %793 = vmatprep.subr.mxu0 %v348
    %794 = vmatpush1.msra.mxu0 %v347
    %795 = vmatprep.subr.mxu0 %v350
    %796 = vmatpush1.msra.mxu0 %v349
    %797 = vmatprep.subr.mxu0 %v352
    %798 = vmatpush1.msra.mxu0 %v351
    %799 = vmatprep.subr.mxu0 %v354
    %800 = vmatpush1.msra.mxu0 %v353
    %801 = vmatprep.subr.mxu0 %v356
    %802 = vmatpush1.msra.mxu0 %v355
    %803 = vmatprep.subr.mxu0 %v358
    %804 = vmatpush1.msra.mxu0 %v357
    %805 = vmatprep.subr.mxu0 %v360
    %806 = vmatpush1.msra.mxu0 %v359
    %807 = vmatprep.subr.mxu0 %v362
    %808 = vmatpush1.msra.mxu0 %v361
    %809 = vmatprep.subr.mxu0 %v364
    %810 = vmatpush1.msra.mxu0 %v363
    %811 = vmatprep.subr.mxu0 %v366
    %812 = vmatpush1.msra.mxu0 %v365
    %813 = vmatprep.subr.mxu0 %v368
    %814 = vmatpush1.msra.mxu0 %v367
    %815 = vmatprep.subr.mxu0 %v370
    %816 = vmatpush1.msra.mxu0 %v369
    %817 = vmatprep.subr.mxu0 %v372
    %818 = vmatpush1.msra.mxu0 %v371
    %819 = vmatprep.subr.mxu0 %v374
    %820 = vmatpush1.msra.mxu0 %v373
    %821 = vmatprep.subr.mxu0 %v419
    %822 = vmatpush1.msra.mxu0 %v416
    %823 = vmatprep.subr.mxu0 0.0
    %824 = vmatpush1.msra.mxu0 0.0
    %825 = vmatprep.subr.mxu0 0.0
    %826 = vmatpush1.msra.mxu0 0.0
    %827 = vmatprep.subr.mxu0 0.0
    %828 = vmatpush1.msra.mxu0 0.0
    %829 = vmatprep.subr.mxu0 0.0
    %830 = vmatpush1.msra.mxu0 0.0
    %831 = vmatprep.subr.mxu0 0.0
    %832 = vmatpush1.msra.mxu0 0.0
    %833 = vmatprep.subr.mxu0 0.0
    %834 = vmatpush1.msra.mxu0 0.0
    %835 = vmatprep.subr.mxu0 0.0
    %836 = vmatpush1.msra.mxu0 0.0
    %837 = vmatprep.subr.mxu0 0.0
    %838 = vmatpush1.msra.mxu0 0.0
    %839 = vmatprep.subr.mxu0 0.0
    %840 = vmatpush1.msra.mxu0 0.0
    %841 = vmatprep.subr.mxu0 0.0
    %842 = vmatpush1.msra.mxu0 0.0
    %843 = vmatprep.subr.mxu0 0.0
    %844 = vmatpush1.msra.mxu0 0.0
    %845 = vmatprep.subr.mxu0 0.0
    %846 = vmatpush1.msra.mxu0 0.0
    %847 = vmatprep.subr.mxu0 0.0
    %848 = vmatpush1.msra.mxu0 0.0
    %849 = vmatprep.subr.mxu0 0.0
    %850 = vmatpush1.msra.mxu0 0.0
    %851 = vmatprep.mubr.f32.mxu0 %v763
    %852 = vmatmul.mubr.f32.gmra.mrb[0].mxu0 %v751
    %v853 = vpop.f32.mrb[0].mxu0
    %v854 = vadd.f32 %v382, %v853
    %v855 = vpop.f32.mrb[0].mxu0
    %v856 = vadd.f32 %v386, %v855
    %857 = vmatprep.mubr.f32.mxu0 %v765
    %858 = vmatmul.mubr.f32.gmra.mrb[0].mxu0 %v752
    %v859 = vpop.f32.mrb[0].mxu0
    %v860 = vadd.f32 %v382, %v859
    %v861 = vpop.f32.mrb[0].mxu0
    %v862 = vadd.f32 %v386, %v861
    %863 = vmatprep.mubr.f32.mxu0 %v767
    %864 = vmatmul.mubr.f32.gmra.mrb[0].mxu0 %v753
    %v865 = vpop.f32.mrb[0].mxu0
    %v866 = vadd.f32 %v382, %v865
    %v867 = vpop.f32.mrb[0].mxu0
    %v868 = vadd.f32 %v386, %v867
    %869 = vmatprep.mubr.f32.mxu0 %v769
    %870 = vmatmul.mubr.f32.gmra.mrb[0].mxu0 %v754
    %v871 = vpop.f32.mrb[0].mxu0
    %v872 = vadd.f32 %v382, %v871
    %v873 = vpop.f32.mrb[0].mxu0
    %v874 = vadd.f32 %v386, %v873
    %875 = vmatprep.mubr.f32.mxu0 %v771
    %876 = vmatmul.mubr.f32.gmra.mrb[0].mxu0 %v755
    %v877 = vpop.f32.mrb[0].mxu0
    %v878 = vadd.f32 %v382, %v877
    %v879 = vpop.f32.mrb[0].mxu0
    %v880 = vadd.f32 %v386, %v879
    %881 = vmatprep.mubr.f32.mxu0 %v773
    %882 = vmatmul.mubr.f32.gmra.mrb[0].mxu0 %v756
    %v883 = vpop.f32.mrb[0].mxu0
    %v884 = vadd.f32 %v382, %v883
    %v885 = vpop.f32.mrb[0].mxu0
    %v886 = vadd.f32 %v386, %v885
    %887 = vmatprep.mubr.f32.mxu0 %v775
    %888 = vmatmul.mubr.f32.gmra.mrb[0].mxu0 %v757
    %v889 = vpop.f32.mrb[0].mxu0
    %v890 = vadd.f32 %v382, %v889
    %v891 = vpop.f32.mrb[0].mxu0
    %v892 = vadd.f32 %v386, %v891
    %893 = vmatprep.mubr.f32.mxu0 %v777
    %894 = vmatmul.mubr.f32.gmra.mrb[0].mxu0 %v758
    %v895 = vpop.f32.mrb[0].mxu0
    %v896 = vadd.f32 %v382, %v895
    %v897 = vpop.f32.mrb[0].mxu0
    %v898 = vadd.f32 %v386, %v897
    %899 = vmatprep.mubr.f32.mxu0 %v779
    %900 = vmatmul.mubr.f32.gmra.mrb[0].mxu0 %v759
    %v901 = vpop.f32.mrb[0].mxu0
    %v902 = vadd.f32 %v382, %v901
    %v903 = vpop.f32.mrb[0].mxu0
    %v904 = vadd.f32 %v386, %v903
    %905 = vmatprep.mubr.f32.mxu0 %v781
    %906 = vmatmul.mubr.f32.gmra.mrb[0].mxu0 %v760
    %v907 = vpop.f32.mrb[0].mxu0
    %v908 = vadd.f32 %v382, %v907
    %v909 = vpop.f32.mrb[0].mxu0
    %v910 = vadd.f32 %v386, %v909
    %911 = vmatprep.mubr.f32.mxu0 %v783
    %912 = vmatmul.mubr.f32.gmra.mrb[0].mxu0 %v761
    %v913 = vpop.f32.mrb[0].mxu0
    %v914 = vadd.f32 %v382, %v913
    %v915 = vpop.f32.mrb[0].mxu0
    %v916 = vadd.f32 %v386, %v915
    %917 = vmatprep.mubr.f32.mxu0 %v785
    %918 = vmatmul.mubr.f32.gmra.mrb[0].mxu0 %v762
    %v919 = vpop.f32.mrb[0].mxu0
    %v920 = vadd.f32 %v382, %v919
    %v921 = vpop.f32.mrb[0].mxu0
    %v922 = vadd.f32 %v386, %v921
    %923 = vdwg.mxu0
    %v924 = vmax.f32 %v854, %v856
    %v925 = vmax.f32 %v860, %v862
    %v926 = vmax.f32 %v866, %v868
    %v927 = vmax.f32 %v872, %v874
    %v928 = vmax.f32 %v878, %v880
    %v929 = vmax.f32 %v884, %v886
    %v930 = vmax.f32 %v890, %v892
    %v931 = vmax.f32 %v896, %v898
    %v932 = vmax.f32 %v902, %v904
    %v933 = vmax.f32 %v908, %v910
    %v934 = vmax.f32 %v914, %v916
    %v935 = vmax.f32 %v920, %v922
    %v936 = vmax.f32 %v558, %v924
    %v937 = vmax.f32 %v559, %v925
    %v938 = vmax.f32 %v560, %v926
    %v939 = vmax.f32 %v561, %v927
    %v940 = vmax.f32 %v562, %v928
    %v941 = vmax.f32 %v563, %v929
    %v942 = vmax.f32 %v564, %v930
    %v943 = vmax.f32 %v565, %v931
    %v944 = vmax.f32 %v566, %v932
    %v945 = vmax.f32 %v567, %v933
    %v946 = vmax.f32 %v568, %v934
    %v947 = vmax.f32 %v569, %v935
    %v948 = vmax.f32 %v936, 0.0
    %v949 = vmax.f32 %v937, 0.0
    %v950 = vmax.f32 %v938, 0.0
    %v951 = vmax.f32 %v939, 0.0
    %v952 = vmax.f32 %v940, 0.0
    %v953 = vmax.f32 %v941, 0.0
    %v954 = vmax.f32 %v942, 0.0
    %v955 = vmax.f32 %v943, 0.0
    %v956 = vmax.f32 %v944, 0.0
    %v957 = vmax.f32 %v945, 0.0
    %v958 = vmax.f32 %v946, 0.0
    %v959 = vmax.f32 %v947, 0.0
    %960 = vst [vmem:[#allocation2] sm:$0xff] %v948
    %961 = vst [vmem:[#allocation2 + $0x8] sm:$0xff] %v949
    %962 = vst [vmem:[#allocation2 + $0x10] sm:$0xff] %v950
    %963 = vst [vmem:[#allocation2 + $0x18] sm:$0xff] %v951
    %964 = vst [vmem:[#allocation2 + $0x20] sm:$0xff] %v952
    %965 = vst [vmem:[#allocation2 + $0x28] sm:$0xff] %v953
    %966 = vst [vmem:[#allocation2 + $0x30] sm:$0xff] %v954
    %967 = vst [vmem:[#allocation2 + $0x38] sm:$0xff] %v955
    %968 = vst [vmem:[#allocation2 + $0x40] sm:$0xff] %v956
    %969 = vst [vmem:[#allocation2 + $0x48] sm:$0xff] %v957
    %970 = vst [vmem:[#allocation2 + $0x50] sm:$0xff] %v958
    %971 = vst [vmem:[#allocation2 + $0x58] sm:$0xff] %v959
    %v972 = vld [vmem:[#allocation2] sm:$0xff]
    %v973 = vld [vmem:[#allocation2 + $0x8] sm:$0xff]
    %v974 = vld [vmem:[#allocation2 + $0x10] sm:$0xff]
    %v975 = vld [vmem:[#allocation2 + $0x18] sm:$0xff]
    %v976 = vld [vmem:[#allocation2 + $0x20] sm:$0xff]
    %v977 = vld [vmem:[#allocation2 + $0x28] sm:$0xff]
    %v978 = vld [vmem:[#allocation2 + $0x30] sm:$0xff]
    %v979 = vld [vmem:[#allocation2 + $0x38] sm:$0xff]
    %v980 = vld [vmem:[#allocation2 + $0x40] sm:$0xff]
    %v981 = vld [vmem:[#allocation2 + $0x48] sm:$0xff]
    %v982 = vld [vmem:[#allocation2 + $0x50] sm:$0xff]
    %v983 = vld [vmem:[#allocation2 + $0x20] sm:$0xff]
    %v984 = vld [vmem:[#allocation2 + $0x28] sm:$0xff]
    %v985 = vld [vmem:[#allocation2 + $0x30] sm:$0xff]
    %v986 = vld [vmem:[#allocation2 + $0x38] sm:$0xff]
    %v987 = vld [vmem:[#allocation2 + $0x40] sm:$0xff]
    %v988 = vld [vmem:[#allocation2 + $0x48] sm:$0xff]
    %v989 = vld [vmem:[#allocation2 + $0x50] sm:$0xff]
    %v990 = vld [vmem:[#allocation2 + $0x58] sm:$0xff]
    %v991 = vld [vmem:[#allocation4] sm:$0xff]
    %v992 = vld [vmem:[#allocation4 + $0x8] sm:$0xff]
    %v993 = vld [vmem:[#allocation4 + $0x10] sm:$0xff]
    %v994 = vld [vmem:[#allocation4 + $0x18] sm:$0xff]
    %v995 = vld [vmem:[#allocation4 + $0x20] sm:$0xff]
    %v996 = vld [vmem:[#allocation4 + $0x28] sm:$0xff]
    %v997 = vld [vmem:[#allocation4 + $0x30] sm:$0xff]
    %v998 = vld [vmem:[#allocation4 + $0x38] sm:$0xff]
    %v999 = vld [vmem:[#allocation4 + $0x40] sm:$0xff]
    %v1000 = vld [vmem:[#allocation4 + $0x48] sm:$0xff]
    %v1001 = vld [vmem:[#allocation4 + $0x50] sm:$0xff]
    %v1002 = vld [vmem:[#allocation4 + $0x58] sm:$0xff]
    %v1003 = vld [vmem:[#allocation4 + $0x60] sm:$0xff]
    %v1004 = vld [vmem:[#allocation4 + $0x68] sm:$0xff]
    %v1005 = vld [vmem:[#allocation4 + $0x70] sm:$0xff]
    %v1006 = vld [vmem:[#allocation4 + $0x78] sm:$0xff]
    %v1007 = vld [vmem:[#allocation4 + $0x80] sm:$0xff]
    %v1008 = vld [vmem:[#allocation4 + $0x88] sm:$0xff]
    %v1009 = vld [vmem:[#allocation4 + $0x90] sm:$0xff]
    %v1010 = vld [vmem:[#allocation4 + $0x98] sm:$0xff]
    %v1011 = vld [vmem:[#allocation4 + $0xa0] sm:$0xff]
    %v1012 = vld [vmem:[#allocation4 + $0xa8] sm:$0xff]
    %v1013 = vld [vmem:[#allocation4 + $0xb0] sm:$0xff]
    %v1014 = vld [vmem:[#allocation4 + $0xb8] sm:$0xff]
    %v1015 = vld [vmem:[#allocation4 + $0xc0] sm:$0xff]
    %v1016 = vld [vmem:[#allocation4 + $0xc8] sm:$0xff]
    %v1017 = vld [vmem:[#allocation4 + $0xd0] sm:$0xff]
    %v1018 = vld [vmem:[#allocation4 + $0xd8] sm:$0xff]
    %v1019 = vld [vmem:[#allocation4 + $0xe0] sm:$0xff]
    %v1020 = vld [vmem:[#allocation4 + $0xe8] sm:$0xff]
    %v1021 = vld [vmem:[#allocation4 + $0xf0] sm:$0xff]
    %v1022 = vld [vmem:[#allocation4 + $0xf8] sm:$0xff]
    %v1023 = vld [vmem:[#allocation4 + $0x100] sm:$0xff]
    %v1024 = vld [vmem:[#allocation4 + $0x108] sm:$0xff]
    %v1025 = vld [vmem:[#allocation4 + $0x110] sm:$0xff]
    %v1026 = vld [vmem:[#allocation4 + $0x118] sm:$0xff]
    %v1027 = vld [vmem:[#allocation4 + $0x120] sm:$0xff]
    %v1028 = vld [vmem:[#allocation4 + $0x128] sm:$0xff]
    %v1029 = vld [vmem:[#allocation4 + $0x130] sm:$0xff]
    %v1030 = vld [vmem:[#allocation4 + $0x138] sm:$0xff]
    %v1031 = vld [vmem:[#allocation4 + $0x140] sm:$0xff]
    %v1032 = vld [vmem:[#allocation4 + $0x148] sm:$0xff]
    %v1033 = vld [vmem:[#allocation4 + $0x150] sm:$0xff]
    %v1034 = vld [vmem:[#allocation4 + $0x158] sm:$0xff]
    %v1035 = vld [vmem:[#allocation4 + $0x160] sm:$0xff]
    %v1036 = vld [vmem:[#allocation4 + $0x168] sm:$0xff]
    %v1037 = vld [vmem:[#allocation4 + $0x170] sm:$0xff]
    %v1038 = vld [vmem:[#allocation4 + $0x178] sm:$0xff]
    %v1039 = vld [vmem:[#allocation4 + $0x180] sm:$0xff]
    %v1040 = vld [vmem:[#allocation4 + $0x188] sm:$0xff]
    %v1041 = vld [vmem:[#allocation4 + $0x190] sm:$0xff]
    %v1042 = vld [vmem:[#allocation4 + $0x198] sm:$0xff]
    %v1043 = vld [vmem:[#allocation4 + $0x1a0] sm:$0xff]
    %v1044 = vld [vmem:[#allocation4 + $0x1a8] sm:$0xff]
    %v1045 = vld [vmem:[#allocation4 + $0x1b0] sm:$0xff]
    %v1046 = vld [vmem:[#allocation4 + $0x1b8] sm:$0xff]
    %v1047 = vld [vmem:[#allocation4 + $0x1c0] sm:$0xff]
    %v1048 = vld [vmem:[#allocation4 + $0x1c8] sm:$0xff]
    %v1049 = vld [vmem:[#allocation4 + $0x1d0] sm:$0xff]
    %v1050 = vld [vmem:[#allocation4 + $0x1d8] sm:$0xff]
    %v1051 = vld [vmem:[#allocation4 + $0x1e0] sm:$0xff]
    %v1052 = vld [vmem:[#allocation4 + $0x1e8] sm:$0xff]
    %v1053 = vld [vmem:[#allocation4 + $0x1f0] sm:$0xff]
    %v1054 = vld [vmem:[#allocation4 + $0x1f8] sm:$0xff]
    %v1055 = vld [vmem:[#allocation4 + $0x200] sm:$0xff]
    %v1056 = vld [vmem:[#allocation4 + $0x208] sm:$0xff]
    %v1057 = vld [vmem:[#allocation4 + $0x210] sm:$0xff]
    %v1058 = vld [vmem:[#allocation4 + $0x218] sm:$0xff]
    %v1059 = vld [vmem:[#allocation4 + $0x220] sm:$0xff]
    %v1060 = vld [vmem:[#allocation4 + $0x228] sm:$0xff]
    %v1061 = vld [vmem:[#allocation4 + $0x230] sm:$0xff]
    %v1062 = vld [vmem:[#allocation4 + $0x238] sm:$0xff]
    %v1063 = vld [vmem:[#allocation4 + $0x240] sm:$0xff]
    %v1064 = vld [vmem:[#allocation4 + $0x248] sm:$0xff]
    %v1065 = vld [vmem:[#allocation4 + $0x250] sm:$0xff]
    %v1066 = vld [vmem:[#allocation4 + $0x258] sm:$0xff]
    %v1067 = vld [vmem:[#allocation4 + $0x260] sm:$0xff]
    %v1068 = vld [vmem:[#allocation4 + $0x268] sm:$0xff]
    %v1069 = vld [vmem:[#allocation4 + $0x270] sm:$0xff]
    %v1070 = vld [vmem:[#allocation4 + $0x278] sm:$0xff]
    %v1071 = vld [vmem:[#allocation4 + $0x280] sm:$0xff]
    %v1072 = vld [vmem:[#allocation4 + $0x288] sm:$0xff]
    %v1073 = vld [vmem:[#allocation4 + $0x290] sm:$0xff]
    %v1074 = vld [vmem:[#allocation4 + $0x298] sm:$0xff]
    %v1075 = vld [vmem:[#allocation4 + $0x2a0] sm:$0xff]
    %v1076 = vld [vmem:[#allocation4 + $0x2a8] sm:$0xff]
    %v1077 = vld [vmem:[#allocation4 + $0x2b0] sm:$0xff]
    %v1078 = vld [vmem:[#allocation4 + $0x2b8] sm:$0xff]
    %v1079 = vld [vmem:[#allocation4 + $0x2c0] sm:$0xff]
    %v1080 = vld [vmem:[#allocation4 + $0x2c8] sm:$0xff]
    %v1081 = vld [vmem:[#allocation4 + $0x2d0] sm:$0xff]
    %v1082 = vld [vmem:[#allocation4 + $0x2d8] sm:$0xff]
    %v1083 = vld [vmem:[#allocation4 + $0x2e0] sm:$0xff]
    %v1084 = vld [vmem:[#allocation4 + $0x2e8] sm:$0xff]
    %v1085 = vld [vmem:[#allocation4 + $0x2f0] sm:$0xff]
    %v1086 = vld [vmem:[#allocation4 + $0x2f8] sm:$0xff]
    %v1087 = vld [vmem:[#allocation4 + $0x300] sm:$0xff]
    %v1088 = vld [vmem:[#allocation4 + $0x308] sm:$0xff]
    %v1089 = vld [vmem:[#allocation4 + $0x310] sm:$0xff]
    %v1090 = vld [vmem:[#allocation4 + $0x318] sm:$0xff]
    %v1091 = vld [vmem:[#allocation4 + $0x320] sm:$0xff]
    %v1092 = vld [vmem:[#allocation4 + $0x328] sm:$0xff]
    %v1093 = vld [vmem:[#allocation4 + $0x330] sm:$0xff]
    %v1094 = vld [vmem:[#allocation4 + $0x338] sm:$0xff]
    %v1095 = vld [vmem:[#allocation4 + $0x340] sm:$0xff]
    %v1096 = vld [vmem:[#allocation4 + $0x348] sm:$0xff]
    %v1097 = vld [vmem:[#allocation4 + $0x350] sm:$0xff]
    %v1098 = vld [vmem:[#allocation4 + $0x358] sm:$0xff]
    %v1099 = vld [vmem:[#allocation4 + $0x360] sm:$0xff]
    %v1100 = vld [vmem:[#allocation4 + $0x368] sm:$0xff]
    %v1101 = vld [vmem:[#allocation4 + $0x370] sm:$0xff]
    %v1102 = vld [vmem:[#allocation4 + $0x378] sm:$0xff]
    %v1103 = vld [vmem:[#allocation4 + $0x380] sm:$0xff]
    %v1104 = vld [vmem:[#allocation4 + $0x388] sm:$0xff]
    %v1105 = vld [vmem:[#allocation4 + $0x390] sm:$0xff]
    %v1106 = vld [vmem:[#allocation4 + $0x398] sm:$0xff]
    %v1107 = vld [vmem:[#allocation4 + $0x3a0] sm:$0xff]
    %v1108 = vld [vmem:[#allocation4 + $0x3a8] sm:$0xff]
    %v1109 = vld [vmem:[#allocation4 + $0x3b0] sm:$0xff]
    %v1110 = vld [vmem:[#allocation4 + $0x3b8] sm:$0xff]
    %v1111 = vld [vmem:[#allocation4 + $0x3c0] sm:$0xff]
    %v1112 = vld [vmem:[#allocation4 + $0x3c8] sm:$0xff]
    %v1113 = vld [vmem:[#allocation4 + $0x3d0] sm:$0xff]
    %v1114 = vld [vmem:[#allocation4 + $0x3d8] sm:$0xff]
    %v1115 = vld [vmem:[#allocation4 + $0x3e0] sm:$0xff]
    %v1116 = vld [vmem:[#allocation4 + $0x3e8] sm:$0xff]
    %v1117 = vld [vmem:[#allocation4 + $0x3f0] sm:$0xff]
    %v1118 = vld [vmem:[#allocation4 + $0x3f8] sm:$0xff]
    %v1119 = vld [vmem:[#allocation4 + $0x400] sm:$0xff]
    %v1120 = vld [vmem:[#allocation4 + $0x408] sm:$0xff]
    %v1121 = vld [vmem:[#allocation4 + $0x410] sm:$0xff]
    %v1122 = vld [vmem:[#allocation4 + $0x418] sm:$0xff]
    %v1123 = vld [vmem:[#allocation4 + $0x420] sm:$0xff]
    %v1124 = vld [vmem:[#allocation4 + $0x428] sm:$0xff]
    %v1125 = vld [vmem:[#allocation4 + $0x430] sm:$0xff]
    %v1126 = vld [vmem:[#allocation4 + $0x438] sm:$0xff]
    %v1127 = vld [vmem:[#allocation4 + $0x440] sm:$0xff]
    %v1128 = vld [vmem:[#allocation4 + $0x448] sm:$0xff]
    %v1129 = vld [vmem:[#allocation4 + $0x450] sm:$0xff]
    %v1130 = vld [vmem:[#allocation4 + $0x458] sm:$0xff]
    %v1131 = vld [vmem:[#allocation4 + $0x460] sm:$0xff]
    %v1132 = vld [vmem:[#allocation4 + $0x468] sm:$0xff]
    %v1133 = vld [vmem:[#allocation4 + $0x470] sm:$0xff]
    %v1134 = vld [vmem:[#allocation4 + $0x478] sm:$0xff]
    %v1135 = vld [vmem:[#allocation4 + $0x480] sm:$0xff]
    %v1136 = vld [vmem:[#allocation4 + $0x488] sm:$0xff]
    %v1137 = vld [vmem:[#allocation4 + $0x490] sm:$0xff]
    %v1138 = vld [vmem:[#allocation4 + $0x498] sm:$0xff]
    %v1139 = vld [vmem:[#allocation4 + $0x4a0] sm:$0xff]
    %v1140 = vld [vmem:[#allocation4 + $0x4a8] sm:$0xff]
    %v1141 = vld [vmem:[#allocation4 + $0x4b0] sm:$0xff]
    %v1142 = vld [vmem:[#allocation4 + $0x4b8] sm:$0xff]
    %v1143 = vld [vmem:[#allocation4 + $0x4c0] sm:$0xff]
    %v1144 = vld [vmem:[#allocation4 + $0x4c8] sm:$0xff]
    %v1145 = vld [vmem:[#allocation4 + $0x4d0] sm:$0xff]
    %v1146 = vld [vmem:[#allocation4 + $0x4d8] sm:$0xff]
    %v1147 = vld [vmem:[#allocation4 + $0x4e0] sm:$0xff]
    %v1148 = vld [vmem:[#allocation4 + $0x4e8] sm:$0xff]
    %v1149 = vld [vmem:[#allocation4 + $0x4f0] sm:$0xff]
    %v1150 = vld [vmem:[#allocation4 + $0x4f8] sm:$0xff]
    %v1151 = vld [vmem:[%s4] sm:$0x3]
    %v1153 = vlaneseq
    %v1154 = vshrl.u32 %v1153, 7
    %v1155 = vsub.s32 0, %v1154
    %v1156 = vrot.slane %v1151, %v1155
    %v1157 = vlaneseq
    %v1158 = vshrl.u32 %v1157, 7
    %v1159 = vsub.s32 1, %v1158
    %v1160 = vrot.slane %v1151, %v1159
    %1163 = vmatprep.subr.mxu0 %v992
    %1164 = vmatpush1.msra.mxu0 %v991
    %1165 = vmatprep.subr.mxu0 %v994
    %1166 = vmatpush1.msra.mxu0 %v993
    %1167 = vmatprep.subr.mxu0 %v996
    %1168 = vmatpush1.msra.mxu0 %v995
    %1169 = vmatprep.subr.mxu0 %v998
    %1170 = vmatpush1.msra.mxu0 %v997
    %1171 = vmatprep.subr.mxu0 %v1000
    %1172 = vmatpush1.msra.mxu0 %v999
    %1173 = vmatprep.subr.mxu0 %v1002
    %1174 = vmatpush1.msra.mxu0 %v1001
    %1175 = vmatprep.subr.mxu0 %v1004
    %1176 = vmatpush1.msra.mxu0 %v1003
    %1177 = vmatprep.subr.mxu0 %v1006
    %1178 = vmatpush1.msra.mxu0 %v1005
    %1179 = vmatprep.subr.mxu0 %v1008
    %1180 = vmatpush1.msra.mxu0 %v1007
    %1181 = vmatprep.subr.mxu0 %v1010
    %1182 = vmatpush1.msra.mxu0 %v1009
    %1183 = vmatprep.subr.mxu0 %v1012
    %1184 = vmatpush1.msra.mxu0 %v1011
    %1185 = vmatprep.subr.mxu0 %v1014
    %1186 = vmatpush1.msra.mxu0 %v1013
    %1187 = vmatprep.subr.mxu0 %v1016
    %1188 = vmatpush1.msra.mxu0 %v1015
    %1189 = vmatprep.subr.mxu0 %v1018
    %1190 = vmatpush1.msra.mxu0 %v1017
    %1191 = vmatprep.subr.mxu0 %v1020
    %1192 = vmatpush1.msra.mxu0 %v1019
    %1193 = vmatprep.subr.mxu0 %v1022
    %1194 = vmatpush1.msra.mxu0 %v1021
    %1195 = vmatprep.subr.mxu0 %v1024
    %1196 = vmatpush1.msra.mxu0 %v1023
    %1197 = vmatprep.subr.mxu0 %v1026
    %1198 = vmatpush1.msra.mxu0 %v1025
    %1199 = vmatprep.subr.mxu0 %v1028
    %1200 = vmatpush1.msra.mxu0 %v1027
    %1201 = vmatprep.subr.mxu0 %v1030
    %1202 = vmatpush1.msra.mxu0 %v1029
    %1203 = vmatprep.subr.mxu0 %v1032
    %1204 = vmatpush1.msra.mxu0 %v1031
    %1205 = vmatprep.subr.mxu0 %v1034
    %1206 = vmatpush1.msra.mxu0 %v1033
    %1207 = vmatprep.subr.mxu0 %v1036
    %1208 = vmatpush1.msra.mxu0 %v1035
    %1209 = vmatprep.subr.mxu0 %v1038
    %1210 = vmatpush1.msra.mxu0 %v1037
    %1211 = vmatprep.subr.mxu0 %v1040
    %1212 = vmatpush1.msra.mxu0 %v1039
    %1213 = vmatprep.subr.mxu0 %v1042
    %1214 = vmatpush1.msra.mxu0 %v1041
    %1215 = vmatprep.subr.mxu0 %v1044
    %1216 = vmatpush1.msra.mxu0 %v1043
    %1217 = vmatprep.subr.mxu0 %v1046
    %1218 = vmatpush1.msra.mxu0 %v1045
    %1219 = vmatprep.subr.mxu0 %v1048
    %1220 = vmatpush1.msra.mxu0 %v1047
    %1221 = vmatprep.subr.mxu0 %v1050
    %1222 = vmatpush1.msra.mxu0 %v1049
    %1223 = vmatprep.subr.mxu0 %v1052
    %1224 = vmatpush1.msra.mxu0 %v1051
    %1225 = vmatprep.subr.mxu0 %v1054
    %1226 = vmatpush1.msra.mxu0 %v1053
    %1227 = vmatprep.mubr.f32.mxu0 %v973
    %1228 = vmatmul.mubr.f32.gmra.mrb[0].mxu0 %v972
    %v1229 = vpop.f32.mrb[0].mxu0
    %v1230 = vadd.f32 %v1156, %v1229
    %v1231 = vpop.f32.mrb[0].mxu0
    %v1232 = vadd.f32 %v1160, %v1231
    %1233 = vmatprep.mubr.f32.mxu0 %v974
    %1234 = vmatmul.mubr.f32.gmra.mrb[0].mxu0 %v973
    %v1235 = vpop.f32.mrb[0].mxu0
    %v1236 = vadd.f32 %v1156, %v1235
    %v1237 = vpop.f32.mrb[0].mxu0
    %v1238 = vadd.f32 %v1160, %v1237
    %1239 = vmatprep.mubr.f32.mxu0 %v975
    %1240 = vmatmul.mubr.f32.gmra.mrb[0].mxu0 %v974
    %v1241 = vpop.f32.mrb[0].mxu0
    %v1242 = vadd.f32 %v1156, %v1241
    %v1243 = vpop.f32.mrb[0].mxu0
    %v1244 = vadd.f32 %v1160, %v1243
    %1245 = vmatprep.mubr.f32.mxu0 %v976
    %1246 = vmatmul.mubr.f32.gmra.mrb[0].mxu0 %v975
    %v1247 = vpop.f32.mrb[0].mxu0
    %v1248 = vadd.f32 %v1156, %v1247
    %v1249 = vpop.f32.mrb[0].mxu0
    %v1250 = vadd.f32 %v1160, %v1249
    %1251 = vmatprep.mubr.f32.mxu0 %v977
    %1252 = vmatmul.mubr.f32.gmra.mrb[0].mxu0 %v976
    %v1253 = vpop.f32.mrb[0].mxu0
    %v1254 = vadd.f32 %v1156, %v1253
    %v1255 = vpop.f32.mrb[0].mxu0
    %v1256 = vadd.f32 %v1160, %v1255
    %1257 = vmatprep.mubr.f32.mxu0 %v978
    %1258 = vmatmul.mubr.f32.gmra.mrb[0].mxu0 %v977
    %v1259 = vpop.f32.mrb[0].mxu0
    %v1260 = vadd.f32 %v1156, %v1259
    %v1261 = vpop.f32.mrb[0].mxu0
    %v1262 = vadd.f32 %v1160, %v1261
    %1263 = vmatprep.mubr.f32.mxu0 %v979
    %1264 = vmatmul.mubr.f32.gmra.mrb[0].mxu0 %v978
    %v1265 = vpop.f32.mrb[0].mxu0
    %v1266 = vadd.f32 %v1156, %v1265
    %v1267 = vpop.f32.mrb[0].mxu0
    %v1268 = vadd.f32 %v1160, %v1267
    %1269 = vmatprep.mubr.f32.mxu0 %v980
    %1270 = vmatmul.mubr.f32.gmra.mrb[0].mxu0 %v979
    %v1271 = vpop.f32.mrb[0].mxu0
    %v1272 = vadd.f32 %v1156, %v1271
    %v1273 = vpop.f32.mrb[0].mxu0
    %v1274 = vadd.f32 %v1160, %v1273
    %1275 = vdwg.mxu0
    %1276 = vmatprep.subr.mxu0 %v1056
    %1277 = vmatpush1.msra.mxu0 %v1055
    %1278 = vmatprep.subr.mxu0 %v1058
    %1279 = vmatpush1.msra.mxu0 %v1057
    %1280 = vmatprep.subr.mxu0 %v1060
    %1281 = vmatpush1.msra.mxu0 %v1059
    %1282 = vmatprep.subr.mxu0 %v1062
    %1283 = vmatpush1.msra.mxu0 %v1061
    %1284 = vmatprep.subr.mxu0 %v1064
    %1285 = vmatpush1.msra.mxu0 %v1063
    %1286 = vmatprep.subr.mxu0 %v1066
    %1287 = vmatpush1.msra.mxu0 %v1065
    %1288 = vmatprep.subr.mxu0 %v1068
    %1289 = vmatpush1.msra.mxu0 %v1067
    %1290 = vmatprep.subr.mxu0 %v1070
    %1291 = vmatpush1.msra.mxu0 %v1069
    %1292 = vmatprep.subr.mxu0 %v1072
    %1293 = vmatpush1.msra.mxu0 %v1071
    %1294 = vmatprep.subr.mxu0 %v1074
    %1295 = vmatpush1.msra.mxu0 %v1073
    %1296 = vmatprep.subr.mxu0 %v1076
    %1297 = vmatpush1.msra.mxu0 %v1075
    %1298 = vmatprep.subr.mxu0 %v1078
    %1299 = vmatpush1.msra.mxu0 %v1077
    %1300 = vmatprep.subr.mxu0 %v1080
    %1301 = vmatpush1.msra.mxu0 %v1079
    %1302 = vmatprep.subr.mxu0 %v1082
    %1303 = vmatpush1.msra.mxu0 %v1081
    %1304 = vmatprep.subr.mxu0 %v1084
    %1305 = vmatpush1.msra.mxu0 %v1083
    %1306 = vmatprep.subr.mxu0 %v1086
    %1307 = vmatpush1.msra.mxu0 %v1085
    %1308 = vmatprep.subr.mxu0 %v1088
    %1309 = vmatpush1.msra.mxu0 %v1087
    %1310 = vmatprep.subr.mxu0 %v1090
    %1311 = vmatpush1.msra.mxu0 %v1089
    %1312 = vmatprep.subr.mxu0 %v1092
    %1313 = vmatpush1.msra.mxu0 %v1091
    %1314 = vmatprep.subr.mxu0 %v1094
    %1315 = vmatpush1.msra.mxu0 %v1093
    %1316 = vmatprep.subr.mxu0 %v1096
    %1317 = vmatpush1.msra.mxu0 %v1095
    %1318 = vmatprep.subr.mxu0 %v1098
    %1319 = vmatpush1.msra.mxu0 %v1097
    %1320 = vmatprep.subr.mxu0 %v1100
    %1321 = vmatpush1.msra.mxu0 %v1099
    %1322 = vmatprep.subr.mxu0 %v1102
    %1323 = vmatpush1.msra.mxu0 %v1101
    %1324 = vmatprep.subr.mxu0 %v1104
    %1325 = vmatpush1.msra.mxu0 %v1103
    %1326 = vmatprep.subr.mxu0 %v1106
    %1327 = vmatpush1.msra.mxu0 %v1105
    %1328 = vmatprep.subr.mxu0 %v1108
    %1329 = vmatpush1.msra.mxu0 %v1107
    %1330 = vmatprep.subr.mxu0 %v1110
    %1331 = vmatpush1.msra.mxu0 %v1109
    %1332 = vmatprep.subr.mxu0 %v1112
    %1333 = vmatpush1.msra.mxu0 %v1111
    %1334 = vmatprep.subr.mxu0 %v1114
    %1335 = vmatpush1.msra.mxu0 %v1113
    %1336 = vmatprep.subr.mxu0 %v1116
    %1337 = vmatpush1.msra.mxu0 %v1115
    %1338 = vmatprep.subr.mxu0 %v1118
    %1339 = vmatpush1.msra.mxu0 %v1117
    %1340 = vmatprep.mubr.f32.mxu0 %v975
    %1341 = vmatmul.mubr.f32.gmra.mrb[0].mxu0 %v974
    %v1342 = vpop.f32.mrb[0].mxu0
    %v1343 = vadd.f32 %v1230, %v1342
    %v1344 = vpop.f32.mrb[0].mxu0
    %v1345 = vadd.f32 %v1232, %v1344
    %1346 = vmatprep.mubr.f32.mxu0 %v976
    %1347 = vmatmul.mubr.f32.gmra.mrb[0].mxu0 %v975
    %v1348 = vpop.f32.mrb[0].mxu0
    %v1349 = vadd.f32 %v1236, %v1348
    %v1350 = vpop.f32.mrb[0].mxu0
    %v1351 = vadd.f32 %v1238, %v1350
    %1352 = vmatprep.mubr.f32.mxu0 %v977
    %1353 = vmatmul.mubr.f32.gmra.mrb[0].mxu0 %v976
    %v1354 = vpop.f32.mrb[0].mxu0
    %v1355 = vadd.f32 %v1242, %v1354
    %v1356 = vpop.f32.mrb[0].mxu0
    %v1357 = vadd.f32 %v1244, %v1356
    %1358 = vmatprep.mubr.f32.mxu0 %v978
    %1359 = vmatmul.mubr.f32.gmra.mrb[0].mxu0 %v977
    %v1360 = vpop.f32.mrb[0].mxu0
    %v1361 = vadd.f32 %v1248, %v1360
    %v1362 = vpop.f32.mrb[0].mxu0
    %v1363 = vadd.f32 %v1250, %v1362
    %1364 = vmatprep.mubr.f32.mxu0 %v979
    %1365 = vmatmul.mubr.f32.gmra.mrb[0].mxu0 %v978
    %v1366 = vpop.f32.mrb[0].mxu0
    %v1367 = vadd.f32 %v1254, %v1366
    %v1368 = vpop.f32.mrb[0].mxu0
    %v1369 = vadd.f32 %v1256, %v1368
    %1370 = vmatprep.mubr.f32.mxu0 %v980
    %1371 = vmatmul.mubr.f32.gmra.mrb[0].mxu0 %v979
    %v1372 = vpop.f32.mrb[0].mxu0
    %v1373 = vadd.f32 %v1260, %v1372
    %v1374 = vpop.f32.mrb[0].mxu0
    %v1375 = vadd.f32 %v1262, %v1374
    %1376 = vmatprep.mubr.f32.mxu0 %v981
    %1377 = vmatmul.mubr.f32.gmra.mrb[0].mxu0 %v980
    %v1378 = vpop.f32.mrb[0].mxu0
    %v1379 = vadd.f32 %v1266, %v1378
    %v1380 = vpop.f32.mrb[0].mxu0
    %v1381 = vadd.f32 %v1268, %v1380
    %1382 = vmatprep.mubr.f32.mxu0 %v982
    %1383 = vmatmul.mubr.f32.gmra.mrb[0].mxu0 %v981
    %v1384 = vpop.f32.mrb[0].mxu0
    %v1385 = vadd.f32 %v1272, %v1384
    %v1386 = vpop.f32.mrb[0].mxu0
    %v1387 = vadd.f32 %v1274, %v1386
    %1388 = vdwg.mxu0
    %1389 = vmatprep.subr.mxu0 %v1120
    %1390 = vmatpush1.msra.mxu0 %v1119
    %1391 = vmatprep.subr.mxu0 %v1122
    %1392 = vmatpush1.msra.mxu0 %v1121
    %1393 = vmatprep.subr.mxu0 %v1124
    %1394 = vmatpush1.msra.mxu0 %v1123
    %1395 = vmatprep.subr.mxu0 %v1126
    %1396 = vmatpush1.msra.mxu0 %v1125
    %1397 = vmatprep.subr.mxu0 %v1128
    %1398 = vmatpush1.msra.mxu0 %v1127
    %1399 = vmatprep.subr.mxu0 %v1130
    %1400 = vmatpush1.msra.mxu0 %v1129
    %1401 = vmatprep.subr.mxu0 %v1132
    %1402 = vmatpush1.msra.mxu0 %v1131
    %1403 = vmatprep.subr.mxu0 %v1134
    %1404 = vmatpush1.msra.mxu0 %v1133
    %1405 = vmatprep.subr.mxu0 %v1136
    %1406 = vmatpush1.msra.mxu0 %v1135
    %1407 = vmatprep.subr.mxu0 %v1138
    %1408 = vmatpush1.msra.mxu0 %v1137
    %1409 = vmatprep.subr.mxu0 %v1140
    %1410 = vmatpush1.msra.mxu0 %v1139
    %1411 = vmatprep.subr.mxu0 %v1142
    %1412 = vmatpush1.msra.mxu0 %v1141
    %1413 = vmatprep.subr.mxu0 %v1144
    %1414 = vmatpush1.msra.mxu0 %v1143
    %1415 = vmatprep.subr.mxu0 %v1146
    %1416 = vmatpush1.msra.mxu0 %v1145
    %1417 = vmatprep.subr.mxu0 %v1148
    %1418 = vmatpush1.msra.mxu0 %v1147
    %1419 = vmatprep.subr.mxu0 %v1150
    %1420 = vmatpush1.msra.mxu0 %v1149
    %1421 = vmatprep.subr.mxu0 0.0
    %1422 = vmatpush1.msra.mxu0 0.0
    %1423 = vmatprep.subr.mxu0 0.0
    %1424 = vmatpush1.msra.mxu0 0.0
    %1425 = vmatprep.subr.mxu0 0.0
    %1426 = vmatpush1.msra.mxu0 0.0
    %1427 = vmatprep.subr.mxu0 0.0
    %1428 = vmatpush1.msra.mxu0 0.0
    %1429 = vmatprep.subr.mxu0 0.0
    %1430 = vmatpush1.msra.mxu0 0.0
    %1431 = vmatprep.subr.mxu0 0.0
    %1432 = vmatpush1.msra.mxu0 0.0
    %1433 = vmatprep.subr.mxu0 0.0
    %1434 = vmatpush1.msra.mxu0 0.0
    %1435 = vmatprep.subr.mxu0 0.0
    %1436 = vmatpush1.msra.mxu0 0.0
    %1437 = vmatprep.subr.mxu0 0.0
    %1438 = vmatpush1.msra.mxu0 0.0
    %1439 = vmatprep.subr.mxu0 0.0
    %1440 = vmatpush1.msra.mxu0 0.0
    %1441 = vmatprep.subr.mxu0 0.0
    %1442 = vmatpush1.msra.mxu0 0.0
    %1443 = vmatprep.subr.mxu0 0.0
    %1444 = vmatpush1.msra.mxu0 0.0
    %1445 = vmatprep.subr.mxu0 0.0
    %1446 = vmatpush1.msra.mxu0 0.0
    %1447 = vmatprep.subr.mxu0 0.0
    %1448 = vmatpush1.msra.mxu0 0.0
    %1449 = vmatprep.subr.mxu0 0.0
    %1450 = vmatpush1.msra.mxu0 0.0
    %1451 = vmatprep.subr.mxu0 0.0
    %1452 = vmatpush1.msra.mxu0 0.0
    %1453 = vmatprep.mubr.f32.mxu0 0.0
    %1454 = vmatmul.mubr.f32.gmra.mrb[0].mxu0 %v983
    %v1455 = vpop.f32.mrb[0].mxu0
    %v1456 = vadd.f32 %v1343, %v1455
    %v1457 = vpop.f32.mrb[0].mxu0
    %v1458 = vadd.f32 %v1345, %v1457
    %1459 = vmatprep.mubr.f32.mxu0 0.0
    %1460 = vmatmul.mubr.f32.gmra.mrb[0].mxu0 %v984
    %v1461 = vpop.f32.mrb[0].mxu0
    %v1462 = vadd.f32 %v1349, %v1461
    %v1463 = vpop.f32.mrb[0].mxu0
    %v1464 = vadd.f32 %v1351, %v1463
    %1465 = vmatprep.mubr.f32.mxu0 0.0
    %1466 = vmatmul.mubr.f32.gmra.mrb[0].mxu0 %v985
    %v1467 = vpop.f32.mrb[0].mxu0
    %v1468 = vadd.f32 %v1355, %v1467
    %v1469 = vpop.f32.mrb[0].mxu0
    %v1470 = vadd.f32 %v1357, %v1469
    %1471 = vmatprep.mubr.f32.mxu0 0.0
    %1472 = vmatmul.mubr.f32.gmra.mrb[0].mxu0 %v986
    %v1473 = vpop.f32.mrb[0].mxu0
    %v1474 = vadd.f32 %v1361, %v1473
    %v1475 = vpop.f32.mrb[0].mxu0
    %v1476 = vadd.f32 %v1363, %v1475
    %1477 = vmatprep.mubr.f32.mxu0 0.0
    %1478 = vmatmul.mubr.f32.gmra.mrb[0].mxu0 %v987
    %v1479 = vpop.f32.mrb[0].mxu0
    %v1480 = vadd.f32 %v1367, %v1479
    %v1481 = vpop.f32.mrb[0].mxu0
    %v1482 = vadd.f32 %v1369, %v1481
    %1483 = vmatprep.mubr.f32.mxu0 0.0
    %1484 = vmatmul.mubr.f32.gmra.mrb[0].mxu0 %v988
    %v1485 = vpop.f32.mrb[0].mxu0
    %v1486 = vadd.f32 %v1373, %v1485
    %v1487 = vpop.f32.mrb[0].mxu0
    %v1488 = vadd.f32 %v1375, %v1487
    %1489 = vmatprep.mubr.f32.mxu0 0.0
    %1490 = vmatmul.mubr.f32.gmra.mrb[0].mxu0 %v989
    %v1491 = vpop.f32.mrb[0].mxu0
    %v1492 = vadd.f32 %v1379, %v1491
    %v1493 = vpop.f32.mrb[0].mxu0
    %v1494 = vadd.f32 %v1381, %v1493
    %1495 = vmatprep.mubr.f32.mxu0 0.0
    %1496 = vmatmul.mubr.f32.gmra.mrb[0].mxu0 %v990
    %v1497 = vpop.f32.mrb[0].mxu0
    %v1498 = vadd.f32 %v1385, %v1497
    %v1499 = vpop.f32.mrb[0].mxu0
    %v1500 = vadd.f32 %v1387, %v1499
    %1501 = vdwg.mxu0
    %v1502 = vmax.f32 %v1456, %v1458
    %v1503 = vmax.f32 %v1462, %v1464
    %v1504 = vmax.f32 %v1468, %v1470
    %v1505 = vmax.f32 %v1474, %v1476
    %v1506 = vmax.f32 %v1480, %v1482
    %v1507 = vmax.f32 %v1486, %v1488
    %v1508 = vmax.f32 %v1492, %v1494
    %v1509 = vmax.f32 %v1498, %v1500
    %v1510 = vmax.f32 %v1502, 0.0
    %v1511 = vmax.f32 %v1503, 0.0
    %v1512 = vmax.f32 %v1504, 0.0
    %v1513 = vmax.f32 %v1505, 0.0
    %v1514 = vmax.f32 %v1506, 0.0
    %v1515 = vmax.f32 %v1507, 0.0
    %v1516 = vmax.f32 %v1508, 0.0
    %v1517 = vmax.f32 %v1509, 0.0
    %1518 = vst [vmem:[#allocation3] sm:$0xff] %v1510
    %1519 = vst [vmem:[#allocation3 + $0x8] sm:$0xff] %v1511
    %1520 = vst [vmem:[#allocation3 + $0x10] sm:$0xff] %v1512
    %1521 = vst [vmem:[#allocation3 + $0x18] sm:$0xff] %v1513
    %1522 = vst [vmem:[#allocation3 + $0x20] sm:$0xff] %v1514
    %1523 = vst [vmem:[#allocation3 + $0x28] sm:$0xff] %v1515
    %1524 = vst [vmem:[#allocation3 + $0x30] sm:$0xff] %v1516
    %1525 = vst [vmem:[#allocation3 + $0x38] sm:$0xff] %v1517
    %v1526 = vld [vmem:[#allocation3] sm:$0xff]
    %v1527 = vld [vmem:[#allocation3 + $0x8] sm:$0xff]
    %v1528 = vmax.f32 %v1526, %v1527
    %v1529 = vld [vmem:[#allocation3 + $0x10] sm:$0xff]
    %v1530 = vld [vmem:[#allocation3 + $0x18] sm:$0xff]
    %v1531 = vmax.f32 %v1529, %v1530
    %v1532 = vld [vmem:[#allocation3 + $0x20] sm:$0xff]
    %v1533 = vld [vmem:[#allocation3 + $0x28] sm:$0xff]
    %v1534 = vmax.f32 %v1532, %v1533
    %v1535 = vld [vmem:[#allocation3 + $0x30] sm:$0xff]
    %v1536 = vld [vmem:[#allocation3 + $0x38] sm:$0xff]
    %v1537 = vmax.f32 %v1535, %v1536
    %v1538 = vld [vmem:[#allocation6] sm:$0xff]
    %v1539 = vld [vmem:[#allocation6 + $0x8] sm:$0xff]
    %v1540 = vld [vmem:[#allocation6 + $0x10] sm:$0xff]
    %v1541 = vld [vmem:[#allocation6 + $0x18] sm:$0xff]
    %v1542 = vld [vmem:[#allocation6 + $0x20] sm:$0xff]
    %v1543 = vld [vmem:[#allocation6 + $0x28] sm:$0xff]
    %v1544 = vld [vmem:[#allocation6 + $0x30] sm:$0xff]
    %v1545 = vld [vmem:[#allocation6 + $0x38] sm:$0xff]
    %v1546 = vld [vmem:[#allocation6 + $0x40] sm:$0xff]
    %v1547 = vld [vmem:[#allocation6 + $0x48] sm:$0xff]
    %v1548 = vld [vmem:[#allocation6 + $0x50] sm:$0xff]
    %v1549 = vld [vmem:[#allocation6 + $0x58] sm:$0xff]
    %v1550 = vld [vmem:[#allocation6 + $0x60] sm:$0xff]
    %v1551 = vld [vmem:[#allocation6 + $0x68] sm:$0xff]
    %v1552 = vld [vmem:[#allocation6 + $0x70] sm:$0xff]
    %v1553 = vld [vmem:[#allocation6 + $0x78] sm:$0xff]
    %v1554 = vld [vmem:[#allocation6 + $0x80] sm:$0xff]
    %v1555 = vld [vmem:[#allocation6 + $0x88] sm:$0xff]
    %v1556 = vld [vmem:[#allocation6 + $0x90] sm:$0xff]
    %v1557 = vld [vmem:[#allocation6 + $0x98] sm:$0xff]
    %v1558 = vld [vmem:[#allocation6 + $0xa0] sm:$0xff]
    %v1559 = vld [vmem:[#allocation6 + $0xa8] sm:$0xff]
    %v1560 = vld [vmem:[#allocation6 + $0xb0] sm:$0xff]
    %v1561 = vld [vmem:[#allocation6 + $0xb8] sm:$0xff]
    %v1562 = vld [vmem:[#allocation6 + $0xc0] sm:$0xff]
    %v1563 = vld [vmem:[#allocation6 + $0xc8] sm:$0xff]
    %v1564 = vld [vmem:[#allocation6 + $0xd0] sm:$0xff]
    %v1565 = vld [vmem:[#allocation6 + $0xd8] sm:$0xff]
    %v1566 = vld [vmem:[#allocation6 + $0xe0] sm:$0xff]
    %v1567 = vld [vmem:[#allocation6 + $0xe8] sm:$0xff]
    %v1568 = vld [vmem:[#allocation6 + $0xf0] sm:$0xff]
    %v1569 = vld [vmem:[#allocation6 + $0xf8] sm:$0xff]
    %v1570 = vld [vmem:[#allocation6 + $0x100] sm:$0xff]
    %v1571 = vld [vmem:[#allocation6 + $0x108] sm:$0xff]
    %v1572 = vld [vmem:[#allocation6 + $0x110] sm:$0xff]
    %v1573 = vld [vmem:[#allocation6 + $0x118] sm:$0xff]
    %v1574 = vld [vmem:[#allocation6 + $0x120] sm:$0xff]
    %v1575 = vld [vmem:[#allocation6 + $0x128] sm:$0xff]
    %v1576 = vld [vmem:[#allocation6 + $0x130] sm:$0xff]
    %v1577 = vld [vmem:[#allocation6 + $0x138] sm:$0xff]
    %v1578 = vld [vmem:[#allocation6 + $0x140] sm:$0xff]
    %v1579 = vld [vmem:[#allocation6 + $0x148] sm:$0xff]
    %v1580 = vld [vmem:[#allocation6 + $0x150] sm:$0xff]
    %v1581 = vld [vmem:[#allocation6 + $0x158] sm:$0xff]
    %v1582 = vld [vmem:[#allocation6 + $0x160] sm:$0xff]
    %v1583 = vld [vmem:[#allocation6 + $0x168] sm:$0xff]
    %v1584 = vld [vmem:[#allocation6 + $0x170] sm:$0xff]
    %v1585 = vld [vmem:[#allocation6 + $0x178] sm:$0xff]
    %v1586 = vld [vmem:[#allocation6 + $0x180] sm:$0xff]
    %v1587 = vld [vmem:[#allocation6 + $0x188] sm:$0xff]
    %v1588 = vld [vmem:[#allocation6 + $0x190] sm:$0xff]
    %v1589 = vld [vmem:[#allocation6 + $0x198] sm:$0xff]
    %v1590 = vld [vmem:[#allocation6 + $0x1a0] sm:$0xff]
    %v1591 = vld [vmem:[#allocation6 + $0x1a8] sm:$0xff]
    %v1592 = vld [vmem:[#allocation6 + $0x1b0] sm:$0xff]
    %v1593 = vld [vmem:[#allocation6 + $0x1b8] sm:$0xff]
    %v1594 = vld [vmem:[#allocation6 + $0x1c0] sm:$0xff]
    %v1595 = vld [vmem:[#allocation6 + $0x1c8] sm:$0xff]
    %v1596 = vld [vmem:[#allocation6 + $0x1d0] sm:$0xff]
    %v1597 = vld [vmem:[#allocation6 + $0x1d8] sm:$0xff]
    %v1598 = vld [vmem:[#allocation6 + $0x1e0] sm:$0xff]
    %v1599 = vld [vmem:[#allocation6 + $0x1e8] sm:$0xff]
    %v1600 = vld [vmem:[#allocation6 + $0x1f0] sm:$0xff]
    %v1601 = vld [vmem:[#allocation6 + $0x1f8] sm:$0xff]
    %v1602 = vld [vmem:[%s6] sm:$0x1]
    %v1604 = vlaneseq
    %v1605 = vshrl.u32 %v1604, 7
    %v1606 = vsub.s32 0, %v1605
    %v1607 = vrot.slane %v1602, %v1606
    %1609 = vmatprep.subr.mxu0 0.0
    %1610 = vmatpush1.msra.mxu0 %v1538
    %1611 = vmatprep.subr.mxu0 0.0
    %1612 = vmatpush1.msra.mxu0 %v1539
    %1613 = vmatprep.subr.mxu0 0.0
    %1614 = vmatpush1.msra.mxu0 %v1540
    %1615 = vmatprep.subr.mxu0 0.0
    %1616 = vmatpush1.msra.mxu0 %v1541
    %1617 = vmatprep.subr.mxu0 0.0
    %1618 = vmatpush1.msra.mxu0 %v1542
    %1619 = vmatprep.subr.mxu0 0.0
    %1620 = vmatpush1.msra.mxu0 %v1543
    %1621 = vmatprep.subr.mxu0 0.0
    %1622 = vmatpush1.msra.mxu0 %v1544
    %1623 = vmatprep.subr.mxu0 0.0
    %1624 = vmatpush1.msra.mxu0 %v1545
    %1625 = vmatprep.subr.mxu0 0.0
    %1626 = vmatpush1.msra.mxu0 %v1546
    %1627 = vmatprep.subr.mxu0 0.0
    %1628 = vmatpush1.msra.mxu0 %v1547
    %1629 = vmatprep.subr.mxu0 0.0
    %1630 = vmatpush1.msra.mxu0 %v1548
    %1631 = vmatprep.subr.mxu0 0.0
    %1632 = vmatpush1.msra.mxu0 %v1549
    %1633 = vmatprep.subr.mxu0 0.0
    %1634 = vmatpush1.msra.mxu0 %v1550
    %1635 = vmatprep.subr.mxu0 0.0
    %1636 = vmatpush1.msra.mxu0 %v1551
    %1637 = vmatprep.subr.mxu0 0.0
    %1638 = vmatpush1.msra.mxu0 %v1552
    %1639 = vmatprep.subr.mxu0 0.0
    %1640 = vmatpush1.msra.mxu0 %v1553
    %1641 = vmatprep.subr.mxu0 0.0
    %1642 = vmatpush1.msra.mxu0 %v1554
    %1643 = vmatprep.subr.mxu0 0.0
    %1644 = vmatpush1.msra.mxu0 %v1555
    %1645 = vmatprep.subr.mxu0 0.0
    %1646 = vmatpush1.msra.mxu0 %v1556
    %1647 = vmatprep.subr.mxu0 0.0
    %1648 = vmatpush1.msra.mxu0 %v1557
    %1649 = vmatprep.subr.mxu0 0.0
    %1650 = vmatpush1.msra.mxu0 %v1558
    %1651 = vmatprep.subr.mxu0 0.0
    %1652 = vmatpush1.msra.mxu0 %v1559
    %1653 = vmatprep.subr.mxu0 0.0
    %1654 = vmatpush1.msra.mxu0 %v1560
    %1655 = vmatprep.subr.mxu0 0.0
    %1656 = vmatpush1.msra.mxu0 %v1561
    %1657 = vmatprep.subr.mxu0 0.0
    %1658 = vmatpush1.msra.mxu0 %v1562
    %1659 = vmatprep.subr.mxu0 0.0
    %1660 = vmatpush1.msra.mxu0 %v1563
    %1661 = vmatprep.subr.mxu0 0.0
    %1662 = vmatpush1.msra.mxu0 %v1564
    %1663 = vmatprep.subr.mxu0 0.0
    %1664 = vmatpush1.msra.mxu0 %v1565
    %1665 = vmatprep.subr.mxu0 0.0
    %1666 = vmatpush1.msra.mxu0 %v1566
    %1667 = vmatprep.subr.mxu0 0.0
    %1668 = vmatpush1.msra.mxu0 %v1567
    %1669 = vmatprep.subr.mxu0 0.0
    %1670 = vmatpush1.msra.mxu0 %v1568
    %1671 = vmatprep.subr.mxu0 0.0
    %1672 = vmatpush1.msra.mxu0 %v1569
    %1673 = vmatprep.mubr.f32.mxu0 %v1531
    %1674 = vmatmul.mubr.f32.gmra.mrb[0].mxu0 %v1528
    %v1675 = vpop.f32.mrb[0].mxu0
    %v1676 = vadd.f32 %v1607, %v1675
    %v1677 = vpop.f32.mrb[0].mxu0
    %1678 = vdwg.mxu0
    %1679 = vmatprep.subr.mxu0 0.0
    %1680 = vmatpush1.msra.mxu0 %v1570
    %1681 = vmatprep.subr.mxu0 0.0
    %1682 = vmatpush1.msra.mxu0 %v1571
    %1683 = vmatprep.subr.mxu0 0.0
    %1684 = vmatpush1.msra.mxu0 %v1572
    %1685 = vmatprep.subr.mxu0 0.0
    %1686 = vmatpush1.msra.mxu0 %v1573
    %1687 = vmatprep.subr.mxu0 0.0
    %1688 = vmatpush1.msra.mxu0 %v1574
    %1689 = vmatprep.subr.mxu0 0.0
    %1690 = vmatpush1.msra.mxu0 %v1575
    %1691 = vmatprep.subr.mxu0 0.0
    %1692 = vmatpush1.msra.mxu0 %v1576
    %1693 = vmatprep.subr.mxu0 0.0
    %1694 = vmatpush1.msra.mxu0 %v1577
    %1695 = vmatprep.subr.mxu0 0.0
    %1696 = vmatpush1.msra.mxu0 %v1578
    %1697 = vmatprep.subr.mxu0 0.0
    %1698 = vmatpush1.msra.mxu0 %v1579
    %1699 = vmatprep.subr.mxu0 0.0
    %1700 = vmatpush1.msra.mxu0 %v1580
    %1701 = vmatprep.subr.mxu0 0.0
    %1702 = vmatpush1.msra.mxu0 %v1581
    %1703 = vmatprep.subr.mxu0 0.0
    %1704 = vmatpush1.msra.mxu0 %v1582
    %1705 = vmatprep.subr.mxu0 0.0
    %1706 = vmatpush1.msra.mxu0 %v1583
    %1707 = vmatprep.subr.mxu0 0.0
    %1708 = vmatpush1.msra.mxu0 %v1584
    %1709 = vmatprep.subr.mxu0 0.0
    %1710 = vmatpush1.msra.mxu0 %v1585
    %1711 = vmatprep.subr.mxu0 0.0
    %1712 = vmatpush1.msra.mxu0 %v1586
    %1713 = vmatprep.subr.mxu0 0.0
    %1714 = vmatpush1.msra.mxu0 %v1587
    %1715 = vmatprep.subr.mxu0 0.0
    %1716 = vmatpush1.msra.mxu0 %v1588
    %1717 = vmatprep.subr.mxu0 0.0
    %1718 = vmatpush1.msra.mxu0 %v1589
    %1719 = vmatprep.subr.mxu0 0.0
    %1720 = vmatpush1.msra.mxu0 %v1590
    %1721 = vmatprep.subr.mxu0 0.0
    %1722 = vmatpush1.msra.mxu0 %v1591
    %1723 = vmatprep.subr.mxu0 0.0
    %1724 = vmatpush1.msra.mxu0 %v1592
    %1725 = vmatprep.subr.mxu0 0.0
    %1726 = vmatpush1.msra.mxu0 %v1593
    %1727 = vmatprep.subr.mxu0 0.0
    %1728 = vmatpush1.msra.mxu0 %v1594
    %1729 = vmatprep.subr.mxu0 0.0
    %1730 = vmatpush1.msra.mxu0 %v1595
    %1731 = vmatprep.subr.mxu0 0.0
    %1732 = vmatpush1.msra.mxu0 %v1596
    %1733 = vmatprep.subr.mxu0 0.0
    %1734 = vmatpush1.msra.mxu0 %v1597
    %1735 = vmatprep.subr.mxu0 0.0
    %1736 = vmatpush1.msra.mxu0 %v1598
    %1737 = vmatprep.subr.mxu0 0.0
    %1738 = vmatpush1.msra.mxu0 %v1599
    %1739 = vmatprep.subr.mxu0 0.0
    %1740 = vmatpush1.msra.mxu0 %v1600
    %1741 = vmatprep.subr.mxu0 0.0
    %1742 = vmatpush1.msra.mxu0 %v1601
    %1743 = vmatprep.mubr.f32.mxu0 %v1537
    %1744 = vmatmul.mubr.f32.gmra.mrb[0].mxu0 %v1534
    %v1745 = vpop.f32.mrb[0].mxu0
    %v1746 = vadd.f32 %v1676, %v1745
    %v1747 = vpop.f32.mrb[0].mxu0
    %1748 = vdwg.mxu0
    %v1749 = vmax.f32 %v1746, 0.0
    %v1750 = vld [vmem:[%s7] sm:$0xff]
    %v1751 = vld [vmem:[%s7 + $0x8] sm:$0xff]
    %v1752 = vld [vmem:[%s7 + $0x10] sm:$0xff]
    %v1753 = vld [vmem:[%s7 + $0x18] sm:$0xff]
    %v1754 = vld [vmem:[%s7 + $0x20] sm:$0xff]
    %v1755 = vld [vmem:[%s7 + $0x28] sm:$0xff]
    %v1756 = vld [vmem:[%s7 + $0x30] sm:$0xff]
    %v1757 = vld [vmem:[%s7 + $0x38] sm:$0xff]
    %v1758 = vld [vmem:[%s7 + $0x40] sm:$0xff]
    %v1759 = vld [vmem:[%s7 + $0x48] sm:$0xff]
    %v1760 = vld [vmem:[%s7 + $0x50] sm:$0xff]
    %v1761 = vld [vmem:[%s7 + $0x58] sm:$0xff]
    %v1762 = vld [vmem:[%s7 + $0x60] sm:$0xff]
    %v1763 = vld [vmem:[%s7 + $0x68] sm:$0xff]
    %v1764 = vld [vmem:[%s7 + $0x70] sm:$0xff]
    %v1765 = vld [vmem:[%s7 + $0x78] sm:$0xff]
    %v1766 = vld [vmem:[%s8] sm:$0x1]
    %v1768 = vlaneseq
    %v1769 = vshrl.u32 %v1768, 7
    %v1770 = vsub.s32 0, %v1769
    %v1771 = vrot.slane %v1766, %v1770
    %1773 = vmatprep.subr.mxu0 0.0
    %1774 = vmatpush1.msra.mxu0 %v1750
    %1775 = vmatprep.subr.mxu0 0.0
    %1776 = vmatpush1.msra.mxu0 %v1751
    %1777 = vmatprep.subr.mxu0 0.0
    %1778 = vmatpush1.msra.mxu0 %v1752
    %1779 = vmatprep.subr.mxu0 0.0
    %1780 = vmatpush1.msra.mxu0 %v1753
    %1781 = vmatprep.subr.mxu0 0.0
    %1782 = vmatpush1.msra.mxu0 %v1754
    %1783 = vmatprep.subr.mxu0 0.0
    %1784 = vmatpush1.msra.mxu0 %v1755
    %1785 = vmatprep.subr.mxu0 0.0
    %1786 = vmatpush1.msra.mxu0 %v1756
    %1787 = vmatprep.subr.mxu0 0.0
    %1788 = vmatpush1.msra.mxu0 %v1757
    %1789 = vmatprep.subr.mxu0 0.0
    %1790 = vmatpush1.msra.mxu0 %v1758
    %1791 = vmatprep.subr.mxu0 0.0
    %1792 = vmatpush1.msra.mxu0 %v1759
    %1793 = vmatprep.subr.mxu0 0.0
    %1794 = vmatpush1.msra.mxu0 %v1760
    %1795 = vmatprep.subr.mxu0 0.0
    %1796 = vmatpush1.msra.mxu0 %v1761
    %1797 = vmatprep.subr.mxu0 0.0
    %1798 = vmatpush1.msra.mxu0 %v1762
    %1799 = vmatprep.subr.mxu0 0.0
    %1800 = vmatpush1.msra.mxu0 %v1763
    %1801 = vmatprep.subr.mxu0 0.0
    %1802 = vmatpush1.msra.mxu0 %v1764
    %1803 = vmatprep.subr.mxu0 0.0
    %1804 = vmatpush1.msra.mxu0 %v1765
    %1805 = vmatprep.subr.mxu0 0.0
    %1806 = vmatpush1.msra.mxu0 0.0
    %1807 = vmatprep.subr.mxu0 0.0
    %1808 = vmatpush1.msra.mxu0 0.0
    %1809 = vmatprep.subr.mxu0 0.0
    %1810 = vmatpush1.msra.mxu0 0.0
    %1811 = vmatprep.subr.mxu0 0.0
    %1812 = vmatpush1.msra.mxu0 0.0
    %1813 = vmatprep.subr.mxu0 0.0
    %1814 = vmatpush1.msra.mxu0 0.0
    %1815 = vmatprep.subr.mxu0 0.0
    %1816 = vmatpush1.msra.mxu0 0.0
    %1817 = vmatprep.subr.mxu0 0.0
    %1818 = vmatpush1.msra.mxu0 0.0
    %1819 = vmatprep.subr.mxu0 0.0
    %1820 = vmatpush1.msra.mxu0 0.0
    %1821 = vmatprep.subr.mxu0 0.0
    %1822 = vmatpush1.msra.mxu0 0.0
    %1823 = vmatprep.subr.mxu0 0.0
    %1824 = vmatpush1.msra.mxu0 0.0
    %1825 = vmatprep.subr.mxu0 0.0
    %1826 = vmatpush1.msra.mxu0 0.0
    %1827 = vmatprep.subr.mxu0 0.0
    %1828 = vmatpush1.msra.mxu0 0.0
    %1829 = vmatprep.subr.mxu0 0.0
    %1830 = vmatpush1.msra.mxu0 0.0
    %1831 = vmatprep.subr.mxu0 0.0
    %1832 = vmatpush1.msra.mxu0 0.0
    %1833 = vmatprep.subr.mxu0 0.0
    %1834 = vmatpush1.msra.mxu0 0.0
    %1835 = vmatprep.subr.mxu0 0.0
    %1836 = vmatpush1.msra.mxu0 0.0
    %1837 = vmatprep.mubr.f32.mxu0 0.0
    %1838 = vmatmul.mubr.f32.gmra.mrb[0].mxu0 %v1749
    %v1839 = vpop.f32.mrb[0].mxu0
    %v1840 = vadd.f32 %v1771, %v1839
    %v1841 = vpop.f32.mrb[0].mxu0
    %1842 = vdwg.mxu0
    %v1843 = vmax.f32 %v1840, 0.0
    %v1844 = vld [vmem:[#allocation8] sm:$0xff]
    %v1845 = vld [vmem:[#allocation8 + $0x8] sm:$0xff]
    %v1846 = vld [vmem:[#allocation8 + $0x10] sm:$0xff]
    %v1847 = vld [vmem:[#allocation8 + $0x18] sm:$0xff]
    %v1848 = vld [vmem:[#allocation8 + $0x20] sm:$0xff]
    %v1849 = vld [vmem:[#allocation8 + $0x28] sm:$0xff]
    %v1850 = vld [vmem:[#allocation8 + $0x30] sm:$0xff]
    %v1851 = vld [vmem:[#allocation8 + $0x38] sm:$0xff]
    %v1852 = vld [vmem:[#allocation8 + $0x40] sm:$0xff]
    %v1853 = vld [vmem:[#allocation8 + $0x48] sm:$0xff]
    %v1854 = vld [vmem:[#allocation8 + $0x50] sm:$0xff]
    %v1855 = vld [vmem:[#allocation8 + $0x58] sm:$0xff]
    %v1856 = vld [vmem:[#allocation8 + $0x60] sm:$0xff]
    %v1857 = vld [vmem:[#allocation8 + $0x68] sm:$0xff]
    %v1858 = vld [vmem:[#allocation8 + $0x70] sm:$0xff]
    %v1859 = vld [vmem:[#allocation8 + $0x78] sm:$0xff]
    %v1860 = vld [vmem:[#allocation9] sm:$0x1]
    %v1862 = vlaneseq
    %v1863 = vshrl.u32 %v1862, 7
    %v1864 = vsub.s32 0, %v1863
    %v1865 = vrot.slane %v1860, %v1864
    %1867 = vmatprep.subr.mxu0 0.0
    %1868 = vmatpush1.msra.mxu0 %v1844
    %1869 = vmatprep.subr.mxu0 0.0
    %1870 = vmatpush1.msra.mxu0 %v1845
    %1871 = vmatprep.subr.mxu0 0.0
    %1872 = vmatpush1.msra.mxu0 %v1846
    %1873 = vmatprep.subr.mxu0 0.0
    %1874 = vmatpush1.msra.mxu0 %v1847
    %1875 = vmatprep.subr.mxu0 0.0
    %1876 = vmatpush1.msra.mxu0 %v1848
    %1877 = vmatprep.subr.mxu0 0.0
    %1878 = vmatpush1.msra.mxu0 %v1849
    %1879 = vmatprep.subr.mxu0 0.0
    %1880 = vmatpush1.msra.mxu0 %v1850
    %1881 = vmatprep.subr.mxu0 0.0
    %1882 = vmatpush1.msra.mxu0 %v1851
    %1883 = vmatprep.subr.mxu0 0.0
    %1884 = vmatpush1.msra.mxu0 %v1852
    %1885 = vmatprep.subr.mxu0 0.0
    %1886 = vmatpush1.msra.mxu0 %v1853
    %1887 = vmatprep.subr.mxu0 0.0
    %1888 = vmatpush1.msra.mxu0 %v1854
    %1889 = vmatprep.subr.mxu0 0.0
    %1890 = vmatpush1.msra.mxu0 %v1855
    %1891 = vmatprep.subr.mxu0 0.0
    %1892 = vmatpush1.msra.mxu0 %v1856
    %1893 = vmatprep.subr.mxu0 0.0
    %1894 = vmatpush1.msra.mxu0 %v1857
    %1895 = vmatprep.subr.mxu0 0.0
    %1896 = vmatpush1.msra.mxu0 %v1858
    %1897 = vmatprep.subr.mxu0 0.0
    %1898 = vmatpush1.msra.mxu0 %v1859
    %1899 = vmatprep.subr.mxu0 0.0
    %1900 = vmatpush1.msra.mxu0 0.0
    %1901 = vmatprep.subr.mxu0 0.0
    %1902 = vmatpush1.msra.mxu0 0.0
    %1903 = vmatprep.subr.mxu0 0.0
    %1904 = vmatpush1.msra.mxu0 0.0
    %1905 = vmatprep.subr.mxu0 0.0
    %1906 = vmatpush1.msra.mxu0 0.0
    %1907 = vmatprep.subr.mxu0 0.0
    %1908 = vmatpush1.msra.mxu0 0.0
    %1909 = vmatprep.subr.mxu0 0.0
    %1910 = vmatpush1.msra.mxu0 0.0
    %1911 = vmatprep.subr.mxu0 0.0
    %1912 = vmatpush1.msra.mxu0 0.0
    %1913 = vmatprep.subr.mxu0 0.0
    %1914 = vmatpush1.msra.mxu0 0.0
    %1915 = vmatprep.subr.mxu0 0.0
    %1916 = vmatpush1.msra.mxu0 0.0
    %1917 = vmatprep.subr.mxu0 0.0
    %1918 = vmatpush1.msra.mxu0 0.0
    %1919 = vmatprep.subr.mxu0 0.0
    %1920 = vmatpush1.msra.mxu0 0.0
    %1921 = vmatprep.subr.mxu0 0.0
    %1922 = vmatpush1.msra.mxu0 0.0
    %1923 = vmatprep.subr.mxu0 0.0
    %1924 = vmatpush1.msra.mxu0 0.0
    %1925 = vmatprep.subr.mxu0 0.0
    %1926 = vmatpush1.msra.mxu0 0.0
    %1927 = vmatprep.subr.mxu0 0.0
    %1928 = vmatpush1.msra.mxu0 0.0
    %1929 = vmatprep.subr.mxu0 0.0
    %1930 = vmatpush1.msra.mxu0 0.0
    %1931 = vmatprep.mubr.f32.mxu0 0.0
    %1932 = vmatmul.mubr.f32.gmra.mrb[0].mxu0 %v1843
    %v1933 = vpop.f32.mrb[0].mxu0
    %v1934 = vadd.f32 %v1865, %v1933
    %v1935 = vpop.f32.mrb[0].mxu0
    %1936 = vdwg.mxu0
    %1937 = vst [vmem:[%s11] sm:$0xff] %v1934
    // Predicated region
    $region62: #{forward.1} parent=1 // pred_check
      _
    $region63: #{forward.1} parent=1 // pred_check_branch
      %1939 = sbr.rel (0) target = $region65
    $region64: #{forward.1} parent=1 // pred_region
      _
    $region65: #{forward.1} parent=1 // pred_fallthru
      _
    // Predicated region
    $region66: #{forward.1} parent=1 // pred_check
      _
    $region67: #{forward.1} parent=1 // pred_check_branch
      %1941 = sbr.rel (0) target = $region69
    $region68: #{forward.1} parent=1 // pred_region
      _
    $region69: #{forward.1} parent=1 // pred_fallthru
      _
    %1942 = vsyncpa [#allocation5], 1
    %1943 = vsyncpa [#allocation7], 1
    %1944 = vsyncpa [#allocation10], 1

</llo_original>
